<compile_context>
chip_gen: v7x
topology: tpu7x:2x2x1
jax: 0.10.0
libtpu: 0.0.40
codegen_flags: <defaults>
</compile_context>

<pallas_src>
import functools

import numpy as np
import jax
import jax.numpy as jnp
from jax import lax
from jax.experimental import pallas as pl
from jax.experimental.pallas import tpu as pltpu


# ---------------------------------------------------------------------------
# Kernel 1: one bidirectional GRU layer (packed-sequence semantics via masking)
# ---------------------------------------------------------------------------
def _gru_bidir_kernel(x_ref, lens_ref, wi_ref, bi_ref, wh_ref, bh_ref,
                      out_ref, hcat_ref, gi_ref, *, T, B, H):
    """Refs:
      x_ref    : (T*B, Din) f32   row = t*B + b (time-major)
      lens_ref : (B, 1)   int32   sequence lengths
      wi_ref   : (Din, 6H) bf16   [W_ih_fwd | W_ih_bwd], gate order r|z|n per direction
      bi_ref   : (1, 6H)  f32
      wh_ref   : (2H, 6H) bf16    block-diagonal [[W_hh_fwd, 0], [0, W_hh_bwd]]
      bh_ref   : (1, 6H)  f32
      out_ref  : (T*B, 2H) f32    fused fwd|bwd outputs (zeros past each length)
      hcat_ref : (B, 2H)  f32     final hidden [h_fwd | h_bwd]
      gi_ref   : (T*B, 6H) f32    scratch: hoisted input projection
    """
    f32 = jnp.float32
    bf16 = jnp.bfloat16

    # (1) Hoisted input projection: one large MXU matmul for the whole sequence and
    #     both directions, instead of 2*T tiny per-step matmuls.
    gi_ref[...] = jnp.dot(x_ref[...].astype(bf16), wi_ref[...],
                          preferred_element_type=f32) + bi_ref[...]

    # (2) Loop-invariant operands hoisted out of the recurrence (no per-step
    #     broadcast_in_dim re-emission).
    lens = lens_ref[...]                                    # (B, 1) int32
    wh = wh_ref[...]                                        # (2H, 6H) bf16
    bh_full = jnp.broadcast_to(bh_ref[...], (B, 6 * H))     # (B, 6H) f32

    def _gate(gi3, gh3, h):
        r = jax.nn.sigmoid(gi3[:, 0:H] + gh3[:, 0:H])
        z = jax.nn.sigmoid(gi3[:, H:2 * H] + gh3[:, H:2 * H])
        n = jnp.tanh(gi3[:, 2 * H:3 * H] + r * gh3[:, 2 * H:3 * H])
        return (1.0 - z) * n + z * h

    # (3) Fused forward/backward recurrence: one (B,2H)x(2H,6H) MXU matmul per step.
    def body(i, hcat):
        t_f = i
        t_b = T - 1 - i
        gh = jnp.dot(hcat.astype(bf16), wh, preferred_element_type=f32) + bh_full

        row_f = pl.multiple_of(t_f * B, B)
        row_b = pl.multiple_of(t_b * B, B)
        gi_f = gi_ref[pl.ds(row_f, B), 0:3 * H]              # (B, 3H)
        gi_b = gi_ref[pl.ds(row_b, B), 3 * H:6 * H]          # (B, 3H)

        h_f = hcat[:, 0:H]
        h_b = hcat[:, H:2 * H]
        cand_f = _gate(gi_f, gh[:, 0:3 * H], h_f)
        cand_b = _gate(gi_b, gh[:, 3 * H:6 * H], h_b)

        valid_f = lens > t_f                                 # (B,1) packed-seq masking
        valid_b = lens > t_b
        out_ref[pl.ds(row_f, B), 0:H] = jnp.where(valid_f, cand_f, 0.0)
        out_ref[pl.ds(row_b, B), H:2 * H] = jnp.where(valid_b, cand_b, 0.0)

        h_f = jnp.where(valid_f, cand_f, h_f)                # freeze hidden past length
        h_b = jnp.where(valid_b, cand_b, h_b)
        return jnp.concatenate([h_f, h_b], axis=-1)

    hcat_ref[...] = lax.fori_loop(0, T, body, jnp.zeros((B, 2 * H), f32))


def _gru_bidir_layer(x2d, lens, wi, bi, wh, bh, *, T, B, H):
    kernel = functools.partial(_gru_bidir_kernel, T=T, B=B, H=H)
    # TODO(synk): for non-toy T/B/H add a batch-tiled grid + BlockSpecs with
    # dimension_semantics=("parallel",...) so v7x's two TensorCores are both used
    # and VMEM stays within its 64 MiB budget.
    return pl.pallas_call(
        kernel,
        out_shape=(jax.ShapeDtypeStruct((T * B, 2 * H), jnp.float32),
                   jax.ShapeDtypeStruct((B, 2 * H), jnp.float32)),
        scratch_shapes=[pltpu.VMEM((T * B, 6 * H), jnp.float32)],
    )(x2d, lens, wi, bi, wh, bh)


# ---------------------------------------------------------------------------
# Kernel 2: fc -> additive attention -> softmax -> broadcast matmul + max-pool
# ---------------------------------------------------------------------------
def _attn_pool_kernel(hcat_ref, enc_rows_ref, enc_wide_ref,
                      wfc_ref, bfc_ref, ws_ref, we_ref, v_ref, out_t_ref,
                      *, Tm, B):
    """Refs:
      hcat_ref     : (B, 2H)     f32   last-layer hidden in SORTED batch order (quirk)
      enc_rows_ref : (Tm*B, 2H)  f32   encoder output, row = t*B + b (original order)
      enc_wide_ref : (Tm, B*2H)  f32   SAME bytes viewed wide (col = i*2H + h)
      wfc/bfc/ws/we/v : fc + attention weights (w* in bf16, biases/v in f32)
      out_t_ref    : (B, B)      f32   local_representation TRANSPOSED (wrapper flips)
    """
    f32 = jnp.float32
    bf16 = jnp.bfloat16
    H2 = enc_rows_ref.shape[1]

    # s = tanh(fc([h_fwd ; h_bwd]))  and its attention projection.
    s = jnp.tanh(jnp.dot(hcat_ref[...].astype(bf16), wfc_ref[...],
                         preferred_element_type=f32) + bfc_ref[...])
    s_proj = jnp.dot(s.astype(bf16), ws_ref[...], preferred_element_type=f32)     # (B,Dd)

    # Additive-attention energies for every (t, b) in one MXU matmul.
    enc_proj = jnp.dot(enc_rows_ref[...].astype(bf16), we_ref[...],
                       preferred_element_type=f32)                                 # (Tm*B,Dd)
    energy = jnp.tanh(enc_proj + jnp.concatenate([s_proj] * Tm, axis=0))           # (Tm*B,Dd)

    # v-projection as a lane (VPU/XLU) reduction -- keeps the width-1 result off the
    # MXU -- assembled as (B, Tm) so the time softmax is a lane-axis softmax.
    v_row = v_ref[...]                                                             # (1, Dd)
    score_cols = [jnp.sum(energy[t * B:(t + 1) * B, :] * v_row,
                          axis=-1, keepdims=True) for t in range(Tm)]              # Tm x (B,1)
    score_bt = jnp.concatenate(score_cols, axis=1)                                 # (B, Tm)

    m = jnp.max(score_bt, axis=1, keepdims=True)
    e = jnp.exp(score_bt - m)
    attn_bt = e * pl.reciprocal(jnp.sum(e, axis=1, keepdims=True), approx=True)    # (B_j,Tm)

    # Quirky broadcast matmul attn_weights.matmul(sent_output) as ONE MXU matmul:
    #   pooled[j, i*2H + h] = sum_t attn[j, t] * enc[i, t, h]
    pooled = jnp.dot(attn_bt.astype(bf16), enc_wide_ref[...].astype(bf16),
                     preferred_element_type=f32)                                   # (B_j,B*2H)

    # AdaptiveMaxPool1d(1) over h: one lane-aligned slice + lane max per encoder batch i.
    cols = [jnp.max(pooled[:, i * H2:(i + 1) * H2], axis=1, keepdims=True)
            for i in range(B)]                                                     # B x (B_j,1)
    out_t_ref[...] = jnp.concatenate(cols, axis=1)        # (B_j, B_i) == result^T


# ---------------------------------------------------------------------------
# Parameter construction (deterministic, synthetic)
# ---------------------------------------------------------------------------
def _init(key, shape, scale=0.1):
    return (scale * jax.random.normal(key, shape)).astype(jnp.float32)


def make_params(key, glove_dim, enc_hid, dec_hid, rnn_layers):
    H = enc_hid
    k = key

    def nk():
        nonlocal k
        k, sub = jax.random.split(k)
        return sub

    params = {"layers": []}
    din = glove_dim
    for _ in range(rnn_layers):
        layer = {}
        for d in ("f", "b"):
            layer[d] = dict(
                wi=_init(nk(), (din, 3 * H)),     # W_ih^T, gate order [r|z|n]
                wh=_init(nk(), (H, 3 * H)),       # W_hh^T
                bi=_init(nk(), (1, 3 * H)),
                bh=_init(nk(), (1, 3 * H)),
            )
        params["layers"].append(layer)
        din = 2 * H
    params["wfc"] = _init(nk(), (2 * H, dec_hid))   # fc weight^T
    params["bfc"] = _init(nk(), (1, dec_hid))
    params["ws"] = _init(nk(), (dec_hid, dec_hid))  # attn weight^T, s-part
    params["we"] = _init(nk(), (2 * H, dec_hid))    # attn weight^T, enc-part
    params["v"] = _init(nk(), (1, dec_hid))         # v weight row (lane reduction)
    return params


def _prep_gru_layer(p_f, p_b):
    """Combine per-direction weights: wi = [Wi_f|Wi_b], wh = blockdiag(Wh_f, Wh_b)."""
    H = p_f["wh"].shape[0]
    wi = jnp.concatenate([p_f["wi"], p_b["wi"]], axis=1).astype(jnp.bfloat16)   # (Din,6H)
    bi = jnp.concatenate([p_f["bi"], p_b["bi"]], axis=1)                        # (1,6H)
    z = jnp.zeros((H, 3 * H), jnp.float32)
    wh = jnp.concatenate(
        [jnp.concatenate([p_f["wh"], z], axis=1),
         jnp.concatenate([z, p_b["wh"]], axis=1)], axis=0).astype(jnp.bfloat16)  # (2H,6H)
    bh = jnp.concatenate([p_f["bh"], p_b["bh"]], axis=1)                         # (1,6H)
    return wi, bi, wh, bh


# ---------------------------------------------------------------------------
# Full forward
# ---------------------------------------------------------------------------
def gru_attn_forward(params, x, seq_len):
    B, T, D = x.shape
    H = params["layers"][0]["f"]["wh"].shape[0]
    seq_len = np.asarray(seq_len)
    idx_sort = np.argsort(-seq_len)          # the reference never unsorts the hidden state
    lens = jnp.asarray(seq_len.astype(np.int32)).reshape(B, 1)

    # time-major flattened activations: row = t*B + b
    inp = jnp.transpose(x, (1, 0, 2)).reshape(T * B, D)
    hcat = None
    for layer in params["layers"]:
        wi, bi, wh, bh = _prep_gru_layer(layer["f"], layer["b"])
        inp, hcat = _gru_bidir_layer(inp, lens, wi, bi, wh, bh, T=T, B=B, H=H)

    # hidden[-2], hidden[-1] of the reference are in sorted-batch order (quirk kept)
    hcat_sorted = hcat[jnp.asarray(idx_sort)]                       # (B, 2H)

    # pad_packed_sequence truncates time to max(seq_len); enc stays in original order.
    Tm = int(seq_len.max())
    enc_rows = inp[: Tm * B]                                        # (Tm*B, 2H)
    # Same HBM bytes viewed wide -- a free XLA reshape replacing the old XLA transpose
    # pass.  (It does get DMA'd into VMEM a second time; see notes.)
    enc_wide = enc_rows.reshape(Tm, B * 2 * H)                      # (Tm, B*2H)

    attn_kernel = functools.partial(_attn_pool_kernel, Tm=Tm, B=B)
    out_t = pl.pallas_call(
        attn_kernel,
        out_shape=jax.ShapeDtypeStruct((B, B), jnp.float32),
    )(hcat_sorted, enc_rows, enc_wide,
      params["wfc"].astype(jnp.bfloat16), params["bfc"],
      params["ws"].astype(jnp.bfloat16), params["we"].astype(jnp.bfloat16),
      params["v"])
    return out_t.T        # kernel emits the (j, i)-ordered matrix; flip to (i, j)


if __name__ == "__main__":
    # Tile-aligned toy sizes: B=8 (one f32 sublane tile), H=Dd=128 (one lane tile),
    # so every dynamic slice/store inside the kernels is an unmasked full-tile access.
    B, T = 8, 8
    glove_dim, enc_hid, dec_hid, rnn_layers = 128, 128, 128, 2

    key = jax.random.PRNGKey(0)
    kx, kp = jax.random.split(key)
    x = jax.random.normal(kx, (B, T, glove_dim), dtype=jnp.float32)
    seq_len = np.array([8, 5, 3, 6, 8, 7, 2, 4], dtype=np.int64)

    params = make_params(kp, glove_dim, enc_hid, dec_hid, rnn_layers)
    out = gru_attn_forward(params, x, seq_len)
    jax.block_until_ready(out)
    assert out.shape == (B, B) and out.dtype == jnp.float32
    print("KERNEL_OK")
</pallas_src>

<mosaic_0001>
module attributes {stable_mosaic.version = 11 : i64} {
  func.func @_gru_bidir_kernel(%arg0: memref<64x128xf32, #tpu.memory_space<vmem>>, %arg1: memref<8x1xi32, #tpu.memory_space<vmem>>, %arg2: memref<128x768xbf16, #tpu.memory_space<vmem>>, %arg3: memref<1x768xf32, #tpu.memory_space<vmem>>, %arg4: memref<256x768xbf16, #tpu.memory_space<vmem>>, %arg5: memref<1x768xf32, #tpu.memory_space<vmem>>, %arg6: memref<64x256xf32, #tpu.memory_space<vmem>>, %arg7: memref<8x256xf32, #tpu.memory_space<vmem>>, %arg8: memref<64x768xf32, #tpu.memory_space<vmem>>) attributes {dimension_semantics = [], scalar_prefetch = 0 : i64, scratch_operands = 1 : i64, tpu.core_type = #tpu.core_type<tc>} {
    %c0 = arith.constant 0 : index
    %c0_0 = arith.constant 0 : index
    %0 = vector.load %arg0[%c0, %c0_0] : memref<64x128xf32, #tpu.memory_space<vmem>>, vector<64x128xf32>
    %1 = arith.truncf %0 : vector<64x128xf32> to vector<64x128xbf16>
    %c0_1 = arith.constant 0 : index
    %c0_2 = arith.constant 0 : index
    %2 = vector.load %arg2[%c0_1, %c0_2] : memref<128x768xbf16, #tpu.memory_space<vmem>>, vector<128x768xbf16>
    %cst = arith.constant dense<0.000000e+00> : vector<64x768xf32>
    %3 = tpu.matmul %1, %2, %cst {dimension_numbers = #tpu.dot_dimension_numbers<[1], [0], [0], [1], [0, 0, 1, 1], [], []>} : vector<64x128xbf16>, vector<128x768xbf16>, vector<64x768xf32> -> vector<64x768xf32>
    %c0_3 = arith.constant 0 : index
    %c0_4 = arith.constant 0 : index
    %4 = vector.load %arg3[%c0_3, %c0_4] : memref<1x768xf32, #tpu.memory_space<vmem>>, vector<1x768xf32>
    %5 = vector.broadcast %4 : vector<1x768xf32> to vector<64x768xf32>
    %6 = arith.addf %3, %5 : vector<64x768xf32>
    %c0_5 = arith.constant 0 : index
    %c0_6 = arith.constant 0 : index
    %7 = vector.load %arg8[%c0_5, %c0_6] : memref<64x768xf32, #tpu.memory_space<vmem>>, vector<64x768xf32>
    tpu.vector_store %arg8[%c0_5, %c0_6], %6 {strides = array<i32>} : memref<64x768xf32, #tpu.memory_space<vmem>>, vector<64x768xf32>,
    %c0_7 = arith.constant 0 : index
    %c0_8 = arith.constant 0 : index
    %8 = vector.load %arg1[%c0_7, %c0_8] : memref<8x1xi32, #tpu.memory_space<vmem>>, vector<8x1xi32>
    %c0_9 = arith.constant 0 : index
    %c0_10 = arith.constant 0 : index
    %9 = vector.load %arg4[%c0_9, %c0_10] : memref<256x768xbf16, #tpu.memory_space<vmem>>, vector<256x768xbf16>
    %c0_11 = arith.constant 0 : index
    %c0_12 = arith.constant 0 : index
    %10 = vector.load %arg5[%c0_11, %c0_12] : memref<1x768xf32, #tpu.memory_space<vmem>>, vector<1x768xf32>
    %11 = vector.shape_cast %10 : vector<1x768xf32> to vector<1x768xf32>
    %12 = vector.broadcast %11 : vector<1x768xf32> to vector<8x768xf32>
    %cst_13 = arith.constant 0.000000e+00 : f32
    %13 = vector.broadcast %cst_13 : f32 to vector<8x256xf32>
    %c0_i32 = arith.constant 0 : i32
    %c8_i32 = arith.constant 8 : i32
    %14 = arith.addi %c0_i32, %c8_i32 : i32
    %c1_i32 = arith.constant 1 : i32
    %15 = scf.for %arg9 = %c0_i32 to %14 step %c1_i32 iter_args(%arg10 = %13) -> (vector<8x256xf32>)  : i32 {
      %c7_i32 = arith.constant 7 : i32
      %17 = arith.subi %c7_i32, %arg9 : i32
      %18 = arith.truncf %arg10 : vector<8x256xf32> to vector<8x256xbf16>
      %cst_17 = arith.constant dense<0.000000e+00> : vector<8x768xf32>
      %19 = tpu.matmul %18, %9, %cst_17 {dimension_numbers = #tpu.dot_dimension_numbers<[1], [0], [0], [1], [0, 0, 1, 1], [], []>} : vector<8x256xbf16>, vector<256x768xbf16>, vector<8x768xf32> -> vector<8x768xf32>
      %20 = arith.addf %19, %12 : vector<8x768xf32>
      %c8_i32_18 = arith.constant 8 : i32
      %21 = arith.muli %arg9, %c8_i32_18 : i32
      %22 = tpu.assume_multiple %21, 8 : i32
      %c8_i32_19 = arith.constant 8 : i32
      %23 = arith.muli %17, %c8_i32_19 : i32
      %24 = tpu.assume_multiple %23, 8 : i32
      %25 = arith.index_cast %22 : i32 to index
      %c0_20 = arith.constant 0 : index
      %26 = vector.load %arg8[%25, %c0_20] : memref<64x768xf32, #tpu.memory_space<vmem>>, vector<8x384xf32>
      %27 = arith.index_cast %24 : i32 to index
      %c384 = arith.constant 384 : index
      %28 = vector.load %arg8[%27, %c384] : memref<64x768xf32, #tpu.memory_space<vmem>>, vector<8x384xf32>
      %29 = vector.extract_strided_slice %arg10 {offsets = [0, 0], sizes = [8, 128], strides = [1, 1]} : vector<8x256xf32> to vector<8x128xf32>
      %30 = vector.extract_strided_slice %arg10 {offsets = [0, 128], sizes = [8, 128], strides = [1, 1]} : vector<8x256xf32> to vector<8x128xf32>
      %31 = vector.extract_strided_slice %20 {offsets = [0, 0], sizes = [8, 384], strides = [1, 1]} : vector<8x768xf32> to vector<8x384xf32>
      %32 = vector.extract_strided_slice %26 {offsets = [0, 0], sizes = [8, 128], strides = [1, 1]} : vector<8x384xf32> to vector<8x128xf32>
      %33 = vector.extract_strided_slice %31 {offsets = [0, 0], sizes = [8, 128], strides = [1, 1]} : vector<8x384xf32> to vector<8x128xf32>
      %34 = arith.addf %32, %33 : vector<8x128xf32>
      %35 = arith.negf %34 : vector<8x128xf32>
      %36 = math.exp %35 : vector<8x128xf32>
      %cst_21 = arith.constant 1.000000e+00 : f32
      %37 = vector.broadcast %cst_21 : f32 to vector<8x128xf32>
      %38 = arith.addf %37, %36 : vector<8x128xf32>
      %39 = arith.divf %37, %38 : vector<8x128xf32>
      %40 = vector.extract_strided_slice %26 {offsets = [0, 128], sizes = [8, 128], strides = [1, 1]} : vector<8x384xf32> to vector<8x128xf32>
      %41 = vector.extract_strided_slice %31 {offsets = [0, 128], sizes = [8, 128], strides = [1, 1]} : vector<8x384xf32> to vector<8x128xf32>
      %42 = arith.addf %40, %41 : vector<8x128xf32>
      %43 = arith.negf %42 : vector<8x128xf32>
      %44 = math.exp %43 : vector<8x128xf32>
      %cst_22 = arith.constant 1.000000e+00 : f32
      %45 = vector.broadcast %cst_22 : f32 to vector<8x128xf32>
      %46 = arith.addf %45, %44 : vector<8x128xf32>
      %47 = arith.divf %45, %46 : vector<8x128xf32>
      %48 = vector.extract_strided_slice %26 {offsets = [0, 256], sizes = [8, 128], strides = [1, 1]} : vector<8x384xf32> to vector<8x128xf32>
      %49 = vector.extract_strided_slice %31 {offsets = [0, 256], sizes = [8, 128], strides = [1, 1]} : vector<8x384xf32> to vector<8x128xf32>
      %50 = arith.mulf %39, %49 : vector<8x128xf32>
      %51 = arith.addf %48, %50 : vector<8x128xf32>
      %52 = math.tanh %51 : vector<8x128xf32>
      %cst_23 = arith.constant 1.000000e+00 : f32
      %53 = vector.broadcast %cst_23 : f32 to vector<8x128xf32>
      %54 = arith.subf %53, %47 : vector<8x128xf32>
      %55 = arith.mulf %54, %52 : vector<8x128xf32>
      %56 = arith.mulf %47, %29 : vector<8x128xf32>
      %57 = arith.addf %55, %56 : vector<8x128xf32>
      %58 = vector.extract_strided_slice %20 {offsets = [0, 384], sizes = [8, 384], strides = [1, 1]} : vector<8x768xf32> to vector<8x384xf32>
      %59 = vector.extract_strided_slice %28 {offsets = [0, 0], sizes = [8, 128], strides = [1, 1]} : vector<8x384xf32> to vector<8x128xf32>
      %60 = vector.extract_strided_slice %58 {offsets = [0, 0], sizes = [8, 128], strides = [1, 1]} : vector<8x384xf32> to vector<8x128xf32>
      %61 = arith.addf %59, %60 : vector<8x128xf32>
      %62 = arith.negf %61 : vector<8x128xf32>
      %63 = math.exp %62 : vector<8x128xf32>
      %cst_24 = arith.constant 1.000000e+00 : f32
      %64 = vector.broadcast %cst_24 : f32 to vector<8x128xf32>
      %65 = arith.addf %64, %63 : vector<8x128xf32>
      %66 = arith.divf %64, %65 : vector<8x128xf32>
      %67 = vector.extract_strided_slice %28 {offsets = [0, 128], sizes = [8, 128], strides = [1, 1]} : vector<8x384xf32> to vector<8x128xf32>
      %68 = vector.extract_strided_slice %58 {offsets = [0, 128], sizes = [8, 128], strides = [1, 1]} : vector<8x384xf32> to vector<8x128xf32>
      %69 = arith.addf %67, %68 : vector<8x128xf32>
      %70 = arith.negf %69 : vector<8x128xf32>
      %71 = math.exp %70 : vector<8x128xf32>
      %cst_25 = arith.constant 1.000000e+00 : f32
      %72 = vector.broadcast %cst_25 : f32 to vector<8x128xf32>
      %73 = arith.addf %72, %71 : vector<8x128xf32>
      %74 = arith.divf %72, %73 : vector<8x128xf32>
      %75 = vector.extract_strided_slice %28 {offsets = [0, 256], sizes = [8, 128], strides = [1, 1]} : vector<8x384xf32> to vector<8x128xf32>
      %76 = vector.extract_strided_slice %58 {offsets = [0, 256], sizes = [8, 128], strides = [1, 1]} : vector<8x384xf32> to vector<8x128xf32>
      %77 = arith.mulf %66, %76 : vector<8x128xf32>
      %78 = arith.addf %75, %77 : vector<8x128xf32>
      %79 = math.tanh %78 : vector<8x128xf32>
      %cst_26 = arith.constant 1.000000e+00 : f32
      %80 = vector.broadcast %cst_26 : f32 to vector<8x128xf32>
      %81 = arith.subf %80, %74 : vector<8x128xf32>
      %82 = arith.mulf %81, %79 : vector<8x128xf32>
      %83 = arith.mulf %74, %30 : vector<8x128xf32>
      %84 = arith.addf %82, %83 : vector<8x128xf32>
      %85 = vector.broadcast %arg9 : i32 to vector<8x1xi32>
      %86 = arith.cmpi sgt, %8, %85 : vector<8x1xi32>
      %87 = vector.broadcast %17 : i32 to vector<8x1xi32>
      %88 = arith.cmpi sgt, %8, %87 : vector<8x1xi32>
      %cst_27 = arith.constant 0.000000e+00 : f32
      %89 = vector.shape_cast %86 : vector<8x1xi1> to vector<8x1xi1>
      %90 = vector.broadcast %89 : vector<8x1xi1> to vector<8x128xi1>
      %91 = vector.broadcast %cst_27 : f32 to vector<8x128xf32>
      %92 = arith.select %90, %57, %91 : vector<8x128xi1>, vector<8x128xf32>
      %93 = arith.index_cast %22 : i32 to index
      %c0_28 = arith.constant 0 : index
      %94 = vector.load %arg6[%93, %c0_28] : memref<64x256xf32, #tpu.memory_space<vmem>>, vector<8x128xf32>
      tpu.vector_store %arg6[%93, %c0_28], %92 {strides = array<i32>} : memref<64x256xf32, #tpu.memory_space<vmem>>, vector<8x128xf32>,
      %cst_29 = arith.constant 0.000000e+00 : f32
      %95 = vector.shape_cast %88 : vector<8x1xi1> to vector<8x1xi1>
      %96 = vector.broadcast %95 : vector<8x1xi1> to vector<8x128xi1>
      %97 = vector.broadcast %cst_29 : f32 to vector<8x128xf32>
      %98 = arith.select %96, %84, %97 : vector<8x128xi1>, vector<8x128xf32>
      %99 = arith.index_cast %24 : i32 to index
      %c128 = arith.constant 128 : index
      %100 = vector.load %arg6[%99, %c128] : memref<64x256xf32, #tpu.memory_space<vmem>>, vector<8x128xf32>
      tpu.vector_store %arg6[%99, %c128], %98 {strides = array<i32>} : memref<64x256xf32, #tpu.memory_space<vmem>>, vector<8x128xf32>,
      %101 = vector.shape_cast %86 : vector<8x1xi1> to vector<8x1xi1>
      %102 = vector.broadcast %101 : vector<8x1xi1> to vector<8x128xi1>
      %103 = arith.select %102, %57, %29 : vector<8x128xi1>, vector<8x128xf32>
      %104 = vector.shape_cast %88 : vector<8x1xi1> to vector<8x1xi1>
      %105 = vector.broadcast %104 : vector<8x1xi1> to vector<8x128xi1>
      %106 = arith.select %105, %84, %30 : vector<8x128xi1>, vector<8x128xf32>
      %107 = tpu.concatenate %103, %106 in 1 : vector<8x128xf32>, vector<8x128xf32> -> vector<8x256xf32>
      scf.yield %107 : vector<8x256xf32>
    }
    %c8_i32_14 = arith.constant 8 : i32
    %c0_15 = arith.constant 0 : index
    %c0_16 = arith.constant 0 : index
    %16 = vector.load %arg7[%c0_15, %c0_16] : memref<8x256xf32, #tpu.memory_space<vmem>>, vector<8x256xf32>
    tpu.vector_store %arg7[%c0_15, %c0_16], %15 {strides = array<i32>} : memref<8x256xf32, #tpu.memory_space<vmem>>, vector<8x256xf32>,
    return
  }
}

</mosaic_0001>

<llo_original>
// kernel: tpu_custom_call.1
$region0: #{tpu_custom_call.1}
  #allocation0 [shape = 'u32[]', space=smem, size = 0x4, offset = 0x4, fixed_abs, tag = 'smem constant byte address 0x4 - core index']
  #allocation1 [shape = 'u32[144,128]{1,0:T(1,128)}', space=vmem, size = 0x12000, scoped, tag = 'internal scratch']
  #allocation2 [shape = 'f32[64,768]{1,0:T(8,128)}', space=vmem, size = 0x30000, scoped, tag = 'scratch operand']
  %s0 = inlined_call_operand.hbm [shape: f32[64,128], index: 0, kind: input, shape index: {}]
  %s1 = inlined_call_operand.vmem [shape: s32[8,1], index: 1, kind: input, shape index: {}]
  %s2 = inlined_call_operand.hbm [shape: bf16[128,768], index: 2, kind: input, shape index: {}]
  %s3 = inlined_call_operand.vmem [shape: f32[1,768], index: 3, kind: input, shape index: {}]
  %s4 = inlined_call_operand.hbm [shape: bf16[256,768], index: 4, kind: input, shape index: {}]
  %s5 = inlined_call_operand.vmem [shape: f32[1,768], index: 5, kind: input, shape index: {}]
  %s6 = inlined_call_operand.hbm [shape: f32[64,256], index: 6, kind: output, shape index: {0}]
  %s7 = inlined_call_operand.hbm [shape: f32[8,256], index: 7, kind: output, shape index: {1}]
  %8 = xla_tuple %s6, %s7
  %s9 = sld [smem:[#allocation0]]
  $region61: #{tpu_custom_call.1} parent=0
    _
  %s11 = ssub.s32 1, %s9
  %s12 = scalar_select 0, %s11, %s9
  $region1: #{tpu_custom_call.1} parent=0
    #allocation3 [shape = 'u8[32768]{0}', space=vmem, size = 0x8000, scoped, tag = 'input window, operand 0, single buffered']
    #allocation4 [shape = 's32[1]{0}', space=sflag, size = 0x4, scoped, tag = 'scoped memory for tpu_custom_call.1']
    #allocation5 [shape = 's32[1]{0}', space=sflag, size = 0x4, scoped, tag = 'scoped memory for tpu_custom_call.1']
    #allocation6 [shape = 'u8[196608]{0}', space=vmem, size = 0x30000, scoped, tag = 'input window, operand 2, single buffered']
    #allocation7 [shape = 's32[1]{0}', space=sflag, size = 0x4, scoped, tag = 'scoped memory for tpu_custom_call.1']
    #allocation8 [shape = 'u8[393216]{0}', space=vmem, size = 0x60000, scoped, tag = 'input window, operand 4, single buffered']
    #allocation9 [shape = 'u8[65536]{0}', space=vmem, size = 0x10000, scoped, tag = 'output window, operand 0, single buffered']
    #allocation10 [shape = 'u8[8192]{0}', space=vmem, size = 0x2000, scoped, tag = 'output window, operand 1, single buffered']
    #allocation11 [shape = 's32[1]{0}', space=sflag, size = 0x4, scoped, tag = 'scoped memory for tpu_custom_call.1']
    %13 = vsyncpa [#allocation4], 0
    %14 = vsyncpa [#allocation7], 0
    %15 = vsyncpa [#allocation5], 0
    %16 = vsyncpa [#allocation11], 0
    // Predicated region
    $region2: #{tpu_custom_call.1} parent=1 // pred_check
      _
    $region3: #{tpu_custom_call.1} parent=1 // pred_check_branch
      %18 = sbr.rel (0) target = $region5
    $region4: #{tpu_custom_call.1} parent=1 // pred_region
      %s20 = ssub.s32 1024, 1024
      %21 = vsyncadd [#allocation4], %s20
      %s22 = sshll.u32 [#allocation3], 4
      %s23 = int_to_ptr.vmem [resolvable:$true] %s22
      %28 = dma.hbm_to_vmem [thread:$0]  %s0, 1024, %s23, [#allocation4], 128, 128, 8
    $region5: #{tpu_custom_call.1} parent=1 // pred_fallthru
      _
    // Predicated region
    $region6: #{tpu_custom_call.1} parent=1 // pred_check
      _
    $region7: #{tpu_custom_call.1} parent=1 // pred_check_branch
      %30 = sbr.rel (0) target = $region9
    $region8: #{tpu_custom_call.1} parent=1 // pred_region
      _
    $region9: #{tpu_custom_call.1} parent=1 // pred_fallthru
      _
    // Predicated region
    $region10: #{tpu_custom_call.1} parent=1 // pred_check
      _
    $region11: #{tpu_custom_call.1} parent=1 // pred_check_branch
      %32 = sbr.rel (0) target = $region13
    $region12: #{tpu_custom_call.1} parent=1 // pred_region
      %s34 = ssub.s32 6144, 6144
      %35 = vsyncadd [#allocation7], %s34
      %s36 = sshll.u32 [#allocation6], 4
      %s37 = int_to_ptr.vmem [resolvable:$true] %s36
      %42 = dma.hbm_to_vmem [thread:$0]  %s2, 6144, %s37, [#allocation7], 384, 384, 24
    $region13: #{tpu_custom_call.1} parent=1 // pred_fallthru
      _
    // Predicated region
    $region14: #{tpu_custom_call.1} parent=1 // pred_check
      _
    $region15: #{tpu_custom_call.1} parent=1 // pred_check_branch
      %44 = sbr.rel (0) target = $region17
    $region16: #{tpu_custom_call.1} parent=1 // pred_region
      _
    $region17: #{tpu_custom_call.1} parent=1 // pred_fallthru
      _
    // Predicated region
    $region18: #{tpu_custom_call.1} parent=1 // pred_check
      _
    $region19: #{tpu_custom_call.1} parent=1 // pred_check_branch
      %46 = sbr.rel (0) target = $region21
    $region20: #{tpu_custom_call.1} parent=1 // pred_region
      %s48 = ssub.s32 12288, 12288
      %49 = vsyncadd [#allocation7], %s48
      %s50 = sshll.u32 [#allocation8], 4
      %s51 = int_to_ptr.vmem [resolvable:$true] %s50
      %56 = dma.hbm_to_vmem [thread:$0]  %s4, 12288, %s51, [#allocation7], 384, 384, 24
    $region21: #{tpu_custom_call.1} parent=1 // pred_fallthru
      _
    // Predicated region
    $region22: #{tpu_custom_call.1} parent=1 // pred_check
      _
    $region23: #{tpu_custom_call.1} parent=1 // pred_check_branch
      %58 = sbr.rel (0) target = $region25
    $region24: #{tpu_custom_call.1} parent=1 // pred_region
      _
    $region25: #{tpu_custom_call.1} parent=1 // pred_fallthru
      _
    // Predicated region
    $region26: #{tpu_custom_call.1} parent=1 // pred_check
      _
    $region27: #{tpu_custom_call.1} parent=1 // pred_check_branch
      %60 = sbr.rel (0) target = $region29
    $region28: #{tpu_custom_call.1} parent=1 // pred_region
      %61 = dma.done [#allocation4], 1024
    $region29: #{tpu_custom_call.1} parent=1 // pred_fallthru
      _
    // Predicated region
    $region30: #{tpu_custom_call.1} parent=1 // pred_check
      _
    $region31: #{tpu_custom_call.1} parent=1 // pred_check_branch
      %63 = sbr.rel (0) target = $region33
    $region32: #{tpu_custom_call.1} parent=1 // pred_region
      %64 = dma.done [#allocation7], 6144
    $region33: #{tpu_custom_call.1} parent=1 // pred_fallthru
      _
    // Predicated region
    $region34: #{tpu_custom_call.1} parent=1 // pred_check
      _
    $region35: #{tpu_custom_call.1} parent=1 // pred_check_branch
      %66 = sbr.rel (0) target = $region37
    $region36: #{tpu_custom_call.1} parent=1 // pred_region
      %67 = dma.done [#allocation7], 12288
    $region37: #{tpu_custom_call.1} parent=1 // pred_fallthru
      _
    %v69 = vld [vmem:[#allocation3] sm:$0xff]
    %v70 = vld [vmem:[#allocation3 + $0x8] sm:$0xff]
    %v71 = vld [vmem:[#allocation3 + $0x10] sm:$0xff]
    %v72 = vld [vmem:[#allocation3 + $0x18] sm:$0xff]
    %v73 = vld [vmem:[#allocation3 + $0x20] sm:$0xff]
    %v74 = vld [vmem:[#allocation3 + $0x28] sm:$0xff]
    %v75 = vld [vmem:[#allocation3 + $0x30] sm:$0xff]
    %v76 = vld [vmem:[#allocation3 + $0x38] sm:$0xff]
    %v77 = vpack.c.bf16 %v70, %v69
    %v78 = vpack.c.bf16 %v72, %v71
    %v79 = vpack.c.bf16 %v74, %v73
    %v80 = vpack.c.bf16 %v76, %v75
    %v81 = vld [vmem:[#allocation6] sm:$0xff]
    %v82 = vld [vmem:[#allocation6 + $0x8] sm:$0xff]
    %v83 = vld [vmem:[#allocation6 + $0x10] sm:$0xff]
    %v84 = vld [vmem:[#allocation6 + $0x18] sm:$0xff]
    %v85 = vld [vmem:[#allocation6 + $0x20] sm:$0xff]
    %v86 = vld [vmem:[#allocation6 + $0x28] sm:$0xff]
    %v87 = vld [vmem:[#allocation6 + $0x30] sm:$0xff]
    %v88 = vld [vmem:[#allocation6 + $0x38] sm:$0xff]
    %v89 = vld [vmem:[#allocation6 + $0x40] sm:$0xff]
    %v90 = vld [vmem:[#allocation6 + $0x48] sm:$0xff]
    %v91 = vld [vmem:[#allocation6 + $0x50] sm:$0xff]
    %v92 = vld [vmem:[#allocation6 + $0x58] sm:$0xff]
    %v93 = vld [vmem:[#allocation6 + $0x60] sm:$0xff]
    %v94 = vld [vmem:[#allocation6 + $0x68] sm:$0xff]
    %v95 = vld [vmem:[#allocation6 + $0x70] sm:$0xff]
    %v96 = vld [vmem:[#allocation6 + $0x78] sm:$0xff]
    %v97 = vld [vmem:[#allocation6 + $0x80] sm:$0xff]
    %v98 = vld [vmem:[#allocation6 + $0x88] sm:$0xff]
    %v99 = vld [vmem:[#allocation6 + $0x90] sm:$0xff]
    %v100 = vld [vmem:[#allocation6 + $0x98] sm:$0xff]
    %v101 = vld [vmem:[#allocation6 + $0xa0] sm:$0xff]
    %v102 = vld [vmem:[#allocation6 + $0xa8] sm:$0xff]
    %v103 = vld [vmem:[#allocation6 + $0xb0] sm:$0xff]
    %v104 = vld [vmem:[#allocation6 + $0xb8] sm:$0xff]
    %v105 = vld [vmem:[#allocation6 + $0xc0] sm:$0xff]
    %v106 = vld [vmem:[#allocation6 + $0xc8] sm:$0xff]
    %v107 = vld [vmem:[#allocation6 + $0xd0] sm:$0xff]
    %v108 = vld [vmem:[#allocation6 + $0xd8] sm:$0xff]
    %v109 = vld [vmem:[#allocation6 + $0xe0] sm:$0xff]
    %v110 = vld [vmem:[#allocation6 + $0xe8] sm:$0xff]
    %v111 = vld [vmem:[#allocation6 + $0xf0] sm:$0xff]
    %v112 = vld [vmem:[#allocation6 + $0xf8] sm:$0xff]
    %v113 = vld [vmem:[#allocation6 + $0x100] sm:$0xff]
    %v114 = vld [vmem:[#allocation6 + $0x108] sm:$0xff]
    %v115 = vld [vmem:[#allocation6 + $0x110] sm:$0xff]
    %v116 = vld [vmem:[#allocation6 + $0x118] sm:$0xff]
    %v117 = vld [vmem:[#allocation6 + $0x120] sm:$0xff]
    %v118 = vld [vmem:[#allocation6 + $0x128] sm:$0xff]
    %v119 = vld [vmem:[#allocation6 + $0x130] sm:$0xff]
    %v120 = vld [vmem:[#allocation6 + $0x138] sm:$0xff]
    %v121 = vld [vmem:[#allocation6 + $0x140] sm:$0xff]
    %v122 = vld [vmem:[#allocation6 + $0x148] sm:$0xff]
    %v123 = vld [vmem:[#allocation6 + $0x150] sm:$0xff]
    %v124 = vld [vmem:[#allocation6 + $0x158] sm:$0xff]
    %v125 = vld [vmem:[#allocation6 + $0x160] sm:$0xff]
    %v126 = vld [vmem:[#allocation6 + $0x168] sm:$0xff]
    %v127 = vld [vmem:[#allocation6 + $0x170] sm:$0xff]
    %v128 = vld [vmem:[#allocation6 + $0x178] sm:$0xff]
    %v129 = vld [vmem:[%s3] sm:$0x3f]
    %v131 = vlaneseq
    %v132 = vshrl.u32 %v131, 7
    %v133 = vsub.s32 0, %v132
    %v134 = vrot.slane %v129, %v133
    %v135 = vlaneseq
    %v136 = vshrl.u32 %v135, 7
    %v137 = vsub.s32 1, %v136
    %v138 = vrot.slane %v129, %v137
    %v139 = vlaneseq
    %v140 = vshrl.u32 %v139, 7
    %v141 = vsub.s32 2, %v140
    %v142 = vrot.slane %v129, %v141
    %v143 = vlaneseq
    %v144 = vshrl.u32 %v143, 7
    %v145 = vsub.s32 3, %v144
    %v146 = vrot.slane %v129, %v145
    %v147 = vlaneseq
    %v148 = vshrl.u32 %v147, 7
    %v149 = vsub.s32 4, %v148
    %v150 = vrot.slane %v129, %v149
    %v151 = vlaneseq
    %v152 = vshrl.u32 %v151, 7
    %v153 = vsub.s32 5, %v152
    %v154 = vrot.slane %v129, %v153
    %v209 = vunpack.c.l.b16 %v81
    %v210 = vunpack.c.h.b16 %v81
    %v211 = vunpack.c.l.b16 %v82
    %v212 = vunpack.c.h.b16 %v82
    %v213 = vunpack.c.l.b16 %v83
    %v214 = vunpack.c.h.b16 %v83
    %v215 = vunpack.c.l.b16 %v84
    %v216 = vunpack.c.h.b16 %v84
    %v217 = vunpack.c.l.b16 %v85
    %v218 = vunpack.c.h.b16 %v85
    %v219 = vunpack.c.l.b16 %v86
    %v220 = vunpack.c.h.b16 %v86
    %v221 = vunpack.c.l.b16 %v87
    %v222 = vunpack.c.h.b16 %v87
    %v223 = vunpack.c.l.b16 %v88
    %v224 = vunpack.c.h.b16 %v88
    %v225 = vunpack.c.l.b16 %v89
    %v226 = vunpack.c.h.b16 %v89
    %v227 = vunpack.c.l.b16 %v90
    %v228 = vunpack.c.h.b16 %v90
    %v229 = vunpack.c.l.b16 %v91
    %v230 = vunpack.c.h.b16 %v91
    %v231 = vunpack.c.l.b16 %v92
    %v232 = vunpack.c.h.b16 %v92
    %v233 = vunpack.c.l.b16 %v93
    %v234 = vunpack.c.h.b16 %v93
    %v235 = vunpack.c.l.b16 %v94
    %v236 = vunpack.c.h.b16 %v94
    %v237 = vunpack.c.l.b16 %v95
    %v238 = vunpack.c.h.b16 %v95
    %v239 = vunpack.c.l.b16 %v96
    %v240 = vunpack.c.h.b16 %v96
    %v241 = vunpack.c.l.b16 %v97
    %v242 = vunpack.c.h.b16 %v97
    %v243 = vunpack.c.l.b16 %v98
    %v244 = vunpack.c.h.b16 %v98
    %v245 = vunpack.c.l.b16 %v99
    %v246 = vunpack.c.h.b16 %v99
    %v247 = vunpack.c.l.b16 %v100
    %v248 = vunpack.c.h.b16 %v100
    %v249 = vunpack.c.l.b16 %v101
    %v250 = vunpack.c.h.b16 %v101
    %v251 = vunpack.c.l.b16 %v102
    %v252 = vunpack.c.h.b16 %v102
    %v253 = vunpack.c.l.b16 %v103
    %v254 = vunpack.c.h.b16 %v103
    %v255 = vunpack.c.l.b16 %v104
    %v256 = vunpack.c.h.b16 %v104
    %v257 = vunpack.c.l.b16 %v105
    %v258 = vunpack.c.h.b16 %v105
    %v259 = vunpack.c.l.b16 %v106
    %v260 = vunpack.c.h.b16 %v106
    %v261 = vunpack.c.l.b16 %v107
    %v262 = vunpack.c.h.b16 %v107
    %v263 = vunpack.c.l.b16 %v108
    %v264 = vunpack.c.h.b16 %v108
    %v265 = vunpack.c.l.b16 %v109
    %v266 = vunpack.c.h.b16 %v109
    %v267 = vunpack.c.l.b16 %v110
    %v268 = vunpack.c.h.b16 %v110
    %v269 = vunpack.c.l.b16 %v111
    %v270 = vunpack.c.h.b16 %v111
    %v271 = vunpack.c.l.b16 %v112
    %v272 = vunpack.c.h.b16 %v112
    %v273 = vunpack.c.l.b16 %v113
    %v274 = vunpack.c.h.b16 %v113
    %v275 = vunpack.c.l.b16 %v114
    %v276 = vunpack.c.h.b16 %v114
    %v277 = vunpack.c.l.b16 %v115
    %v278 = vunpack.c.h.b16 %v115
    %v279 = vunpack.c.l.b16 %v116
    %v280 = vunpack.c.h.b16 %v116
    %v281 = vunpack.c.l.b16 %v117
    %v282 = vunpack.c.h.b16 %v117
    %v283 = vunpack.c.l.b16 %v118
    %v284 = vunpack.c.h.b16 %v118
    %v285 = vunpack.c.l.b16 %v119
    %v286 = vunpack.c.h.b16 %v119
    %v287 = vunpack.c.l.b16 %v120
    %v288 = vunpack.c.h.b16 %v120
    %v289 = vunpack.c.l.b16 %v121
    %v290 = vunpack.c.h.b16 %v121
    %v291 = vunpack.c.l.b16 %v122
    %v292 = vunpack.c.h.b16 %v122
    %v293 = vunpack.c.l.b16 %v123
    %v294 = vunpack.c.h.b16 %v123
    %v295 = vunpack.c.l.b16 %v124
    %v296 = vunpack.c.h.b16 %v124
    %v297 = vunpack.c.l.b16 %v125
    %v298 = vunpack.c.h.b16 %v125
    %v299 = vunpack.c.l.b16 %v126
    %v300 = vunpack.c.h.b16 %v126
    %v301 = vunpack.c.l.b16 %v127
    %v302 = vunpack.c.h.b16 %v127
    %v303 = vunpack.c.l.b16 %v128
    %v304 = vunpack.c.h.b16 %v128
    %v305 = vpack.c.b16 %v215, %v209
    %v306 = vpack.c.b16 %v216, %v210
    %v307 = vpack.c.b16 %v217, %v211
    %v308 = vpack.c.b16 %v218, %v212
    %v309 = vpack.c.b16 %v219, %v213
    %v310 = vpack.c.b16 %v220, %v214
    %v311 = vpack.c.b16 %v227, %v221
    %v312 = vpack.c.b16 %v228, %v222
    %v313 = vpack.c.b16 %v229, %v223
    %v314 = vpack.c.b16 %v230, %v224
    %v315 = vpack.c.b16 %v231, %v225
    %v316 = vpack.c.b16 %v232, %v226
    %v317 = vpack.c.b16 %v239, %v233
    %v318 = vpack.c.b16 %v240, %v234
    %v319 = vpack.c.b16 %v241, %v235
    %v320 = vpack.c.b16 %v242, %v236
    %v321 = vpack.c.b16 %v243, %v237
    %v322 = vpack.c.b16 %v244, %v238
    %v323 = vpack.c.b16 %v251, %v245
    %v324 = vpack.c.b16 %v252, %v246
    %v325 = vpack.c.b16 %v253, %v247
    %v326 = vpack.c.b16 %v254, %v248
    %v327 = vpack.c.b16 %v255, %v249
    %v328 = vpack.c.b16 %v256, %v250
    %v329 = vpack.c.b16 %v263, %v257
    %v330 = vpack.c.b16 %v264, %v258
    %v331 = vpack.c.b16 %v265, %v259
    %v332 = vpack.c.b16 %v266, %v260
    %v333 = vpack.c.b16 %v267, %v261
    %v334 = vpack.c.b16 %v268, %v262
    %v335 = vpack.c.b16 %v275, %v269
    %v336 = vpack.c.b16 %v276, %v270
    %v337 = vpack.c.b16 %v277, %v271
    %v338 = vpack.c.b16 %v278, %v272
    %v339 = vpack.c.b16 %v279, %v273
    %v340 = vpack.c.b16 %v280, %v274
    %v341 = vpack.c.b16 %v287, %v281
    %v342 = vpack.c.b16 %v288, %v282
    %v343 = vpack.c.b16 %v289, %v283
    %v344 = vpack.c.b16 %v290, %v284
    %v345 = vpack.c.b16 %v291, %v285
    %v346 = vpack.c.b16 %v292, %v286
    %v347 = vpack.c.b16 %v299, %v293
    %v348 = vpack.c.b16 %v300, %v294
    %v349 = vpack.c.b16 %v301, %v295
    %v350 = vpack.c.b16 %v302, %v296
    %v351 = vpack.c.b16 %v303, %v297
    %v352 = vpack.c.b16 %v304, %v298
    %401 = vmatprep.subr.bf16.mxu0 %v306
    %402 = vmatpush1.bf16.msra.mxu0 %v305
    %403 = vmatprep.subr.bf16.mxu0 %v312
    %404 = vmatpush1.bf16.msra.mxu0 %v311
    %405 = vmatprep.subr.bf16.mxu0 %v318
    %406 = vmatpush1.bf16.msra.mxu0 %v317
    %407 = vmatprep.subr.bf16.mxu0 %v324
    %408 = vmatpush1.bf16.msra.mxu0 %v323
    %409 = vmatprep.subr.bf16.mxu0 %v330
    %410 = vmatpush1.bf16.msra.mxu0 %v329
    %411 = vmatprep.subr.bf16.mxu0 %v336
    %412 = vmatpush1.bf16.msra.mxu0 %v335
    %413 = vmatprep.subr.bf16.mxu0 %v342
    %414 = vmatpush1.bf16.msra.mxu0 %v341
    %415 = vmatprep.subr.bf16.mxu0 %v348
    %416 = vmatpush1.bf16.msra.mxu0 %v347
    %417 = vmatprep.subr.bf16.mxu0 0
    %418 = vmatpush1.bf16.msra.mxu0 0
    %419 = vmatprep.subr.bf16.mxu0 0
    %420 = vmatpush1.bf16.msra.mxu0 0
    %421 = vmatprep.subr.bf16.mxu0 0
    %422 = vmatpush1.bf16.msra.mxu0 0
    %423 = vmatprep.subr.bf16.mxu0 0
    %424 = vmatpush1.bf16.msra.mxu0 0
    %425 = vmatprep.subr.bf16.mxu0 0
    %426 = vmatpush1.bf16.msra.mxu0 0
    %427 = vmatprep.subr.bf16.mxu0 0
    %428 = vmatpush1.bf16.msra.mxu0 0
    %429 = vmatprep.subr.bf16.mxu0 0
    %430 = vmatpush1.bf16.msra.mxu0 0
    %431 = vmatprep.subr.bf16.mxu0 0
    %432 = vmatpush1.bf16.msra.mxu0 0
    %433 = vmatprep.mubr.bf16.mxu0 0
    %434 = vmatmul.mubr.bf16.gmra.mrb[0].mxu0 %v77
    %v435 = vpop.f32.mrb[0].mxu0
    %v436 = vadd.f32 %v134, %v435
    %v437 = vpop.f32.mrb[0].mxu0
    %v438 = vadd.f32 %v138, %v437
    %v439 = vpop.f32.mrb[0].mxu0
    %v440 = vadd.f32 %v134, %v439
    %v441 = vpop.f32.mrb[0].mxu0
    %v442 = vadd.f32 %v138, %v441
    %443 = vmatprep.mubr.bf16.mxu0 0
    %444 = vmatmul.mubr.bf16.gmra.mrb[0].mxu0 %v78
    %v445 = vpop.f32.mrb[0].mxu0
    %v446 = vadd.f32 %v134, %v445
    %v447 = vpop.f32.mrb[0].mxu0
    %v448 = vadd.f32 %v138, %v447
    %v449 = vpop.f32.mrb[0].mxu0
    %v450 = vadd.f32 %v134, %v449
    %v451 = vpop.f32.mrb[0].mxu0
    %v452 = vadd.f32 %v138, %v451
    %453 = vmatprep.mubr.bf16.mxu0 0
    %454 = vmatmul.mubr.bf16.gmra.mrb[0].mxu0 %v79
    %v455 = vpop.f32.mrb[0].mxu0
    %v456 = vadd.f32 %v134, %v455
    %v457 = vpop.f32.mrb[0].mxu0
    %v458 = vadd.f32 %v138, %v457
    %v459 = vpop.f32.mrb[0].mxu0
    %v460 = vadd.f32 %v134, %v459
    %v461 = vpop.f32.mrb[0].mxu0
    %v462 = vadd.f32 %v138, %v461
    %463 = vmatprep.mubr.bf16.mxu0 0
    %464 = vmatmul.mubr.bf16.gmra.mrb[0].mxu0 %v80
    %v465 = vpop.f32.mrb[0].mxu0
    %v466 = vadd.f32 %v134, %v465
    %v467 = vpop.f32.mrb[0].mxu0
    %v468 = vadd.f32 %v138, %v467
    %v469 = vpop.f32.mrb[0].mxu0
    %v470 = vadd.f32 %v134, %v469
    %v471 = vpop.f32.mrb[0].mxu0
    %v472 = vadd.f32 %v138, %v471
    %473 = vdwg.mxu0
    %474 = vmatprep.subr.bf16.mxu0 %v308
    %475 = vmatpush1.bf16.msra.mxu0 %v307
    %476 = vmatprep.subr.bf16.mxu0 %v314
    %477 = vmatpush1.bf16.msra.mxu0 %v313
    %478 = vmatprep.subr.bf16.mxu0 %v320
    %479 = vmatpush1.bf16.msra.mxu0 %v319
    %480 = vmatprep.subr.bf16.mxu0 %v326
    %481 = vmatpush1.bf16.msra.mxu0 %v325
    %482 = vmatprep.subr.bf16.mxu0 %v332
    %483 = vmatpush1.bf16.msra.mxu0 %v331
    %484 = vmatprep.subr.bf16.mxu0 %v338
    %485 = vmatpush1.bf16.msra.mxu0 %v337
    %486 = vmatprep.subr.bf16.mxu0 %v344
    %487 = vmatpush1.bf16.msra.mxu0 %v343
    %488 = vmatprep.subr.bf16.mxu0 %v350
    %489 = vmatpush1.bf16.msra.mxu0 %v349
    %490 = vmatprep.subr.bf16.mxu0 0
    %491 = vmatpush1.bf16.msra.mxu0 0
    %492 = vmatprep.subr.bf16.mxu0 0
    %493 = vmatpush1.bf16.msra.mxu0 0
    %494 = vmatprep.subr.bf16.mxu0 0
    %495 = vmatpush1.bf16.msra.mxu0 0
    %496 = vmatprep.subr.bf16.mxu0 0
    %497 = vmatpush1.bf16.msra.mxu0 0
    %498 = vmatprep.subr.bf16.mxu0 0
    %499 = vmatpush1.bf16.msra.mxu0 0
    %500 = vmatprep.subr.bf16.mxu0 0
    %501 = vmatpush1.bf16.msra.mxu0 0
    %502 = vmatprep.subr.bf16.mxu0 0
    %503 = vmatpush1.bf16.msra.mxu0 0
    %504 = vmatprep.subr.bf16.mxu0 0
    %505 = vmatpush1.bf16.msra.mxu0 0
    %506 = vmatprep.mubr.bf16.mxu0 0
    %507 = vmatmul.mubr.bf16.gmra.mrb[0].mxu0 %v77
    %v508 = vpop.f32.mrb[0].mxu0
    %v509 = vadd.f32 %v142, %v508
    %v510 = vpop.f32.mrb[0].mxu0
    %v511 = vadd.f32 %v146, %v510
    %v512 = vpop.f32.mrb[0].mxu0
    %v513 = vadd.f32 %v142, %v512
    %v514 = vpop.f32.mrb[0].mxu0
    %v515 = vadd.f32 %v146, %v514
    %516 = vmatprep.mubr.bf16.mxu0 0
    %517 = vmatmul.mubr.bf16.gmra.mrb[0].mxu0 %v78
    %v518 = vpop.f32.mrb[0].mxu0
    %v519 = vadd.f32 %v142, %v518
    %v520 = vpop.f32.mrb[0].mxu0
    %v521 = vadd.f32 %v146, %v520
    %v522 = vpop.f32.mrb[0].mxu0
    %v523 = vadd.f32 %v142, %v522
    %v524 = vpop.f32.mrb[0].mxu0
    %v525 = vadd.f32 %v146, %v524
    %526 = vmatprep.mubr.bf16.mxu0 0
    %527 = vmatmul.mubr.bf16.gmra.mrb[0].mxu0 %v79
    %v528 = vpop.f32.mrb[0].mxu0
    %v529 = vadd.f32 %v142, %v528
    %v530 = vpop.f32.mrb[0].mxu0
    %v531 = vadd.f32 %v146, %v530
    %v532 = vpop.f32.mrb[0].mxu0
    %v533 = vadd.f32 %v142, %v532
    %v534 = vpop.f32.mrb[0].mxu0
    %v535 = vadd.f32 %v146, %v534
    %536 = vmatprep.mubr.bf16.mxu0 0
    %537 = vmatmul.mubr.bf16.gmra.mrb[0].mxu0 %v80
    %v538 = vpop.f32.mrb[0].mxu0
    %v539 = vadd.f32 %v142, %v538
    %v540 = vpop.f32.mrb[0].mxu0
    %v541 = vadd.f32 %v146, %v540
    %v542 = vpop.f32.mrb[0].mxu0
    %v543 = vadd.f32 %v142, %v542
    %v544 = vpop.f32.mrb[0].mxu0
    %v545 = vadd.f32 %v146, %v544
    %546 = vdwg.mxu0
    %547 = vmatprep.subr.bf16.mxu0 %v310
    %548 = vmatpush1.bf16.msra.mxu0 %v309
    %549 = vmatprep.subr.bf16.mxu0 %v316
    %550 = vmatpush1.bf16.msra.mxu0 %v315
    %551 = vmatprep.subr.bf16.mxu0 %v322
    %552 = vmatpush1.bf16.msra.mxu0 %v321
    %553 = vmatprep.subr.bf16.mxu0 %v328
    %554 = vmatpush1.bf16.msra.mxu0 %v327
    %555 = vmatprep.subr.bf16.mxu0 %v334
    %556 = vmatpush1.bf16.msra.mxu0 %v333
    %557 = vmatprep.subr.bf16.mxu0 %v340
    %558 = vmatpush1.bf16.msra.mxu0 %v339
    %559 = vmatprep.subr.bf16.mxu0 %v346
    %560 = vmatpush1.bf16.msra.mxu0 %v345
    %561 = vmatprep.subr.bf16.mxu0 %v352
    %562 = vmatpush1.bf16.msra.mxu0 %v351
    %563 = vmatprep.subr.bf16.mxu0 0
    %564 = vmatpush1.bf16.msra.mxu0 0
    %565 = vmatprep.subr.bf16.mxu0 0
    %566 = vmatpush1.bf16.msra.mxu0 0
    %567 = vmatprep.subr.bf16.mxu0 0
    %568 = vmatpush1.bf16.msra.mxu0 0
    %569 = vmatprep.subr.bf16.mxu0 0
    %570 = vmatpush1.bf16.msra.mxu0 0
    %571 = vmatprep.subr.bf16.mxu0 0
    %572 = vmatpush1.bf16.msra.mxu0 0
    %573 = vmatprep.subr.bf16.mxu0 0
    %574 = vmatpush1.bf16.msra.mxu0 0
    %575 = vmatprep.subr.bf16.mxu0 0
    %576 = vmatpush1.bf16.msra.mxu0 0
    %577 = vmatprep.subr.bf16.mxu0 0
    %578 = vmatpush1.bf16.msra.mxu0 0
    %579 = vmatprep.mubr.bf16.mxu0 0
    %580 = vmatmul.mubr.bf16.gmra.mrb[0].mxu0 %v77
    %v581 = vpop.f32.mrb[0].mxu0
    %v582 = vadd.f32 %v150, %v581
    %v583 = vpop.f32.mrb[0].mxu0
    %v584 = vadd.f32 %v154, %v583
    %v585 = vpop.f32.mrb[0].mxu0
    %v586 = vadd.f32 %v150, %v585
    %v587 = vpop.f32.mrb[0].mxu0
    %v588 = vadd.f32 %v154, %v587
    %589 = vmatprep.mubr.bf16.mxu0 0
    %590 = vmatmul.mubr.bf16.gmra.mrb[0].mxu0 %v78
    %v591 = vpop.f32.mrb[0].mxu0
    %v592 = vadd.f32 %v150, %v591
    %v593 = vpop.f32.mrb[0].mxu0
    %v594 = vadd.f32 %v154, %v593
    %v595 = vpop.f32.mrb[0].mxu0
    %v596 = vadd.f32 %v150, %v595
    %v597 = vpop.f32.mrb[0].mxu0
    %v598 = vadd.f32 %v154, %v597
    %599 = vmatprep.mubr.bf16.mxu0 0
    %600 = vmatmul.mubr.bf16.gmra.mrb[0].mxu0 %v79
    %v601 = vpop.f32.mrb[0].mxu0
    %v602 = vadd.f32 %v150, %v601
    %v603 = vpop.f32.mrb[0].mxu0
    %v604 = vadd.f32 %v154, %v603
    %v605 = vpop.f32.mrb[0].mxu0
    %v606 = vadd.f32 %v150, %v605
    %v607 = vpop.f32.mrb[0].mxu0
    %v608 = vadd.f32 %v154, %v607
    %609 = vmatprep.mubr.bf16.mxu0 0
    %610 = vmatmul.mubr.bf16.gmra.mrb[0].mxu0 %v80
    %v611 = vpop.f32.mrb[0].mxu0
    %v612 = vadd.f32 %v150, %v611
    %v613 = vpop.f32.mrb[0].mxu0
    %v614 = vadd.f32 %v154, %v613
    %v615 = vpop.f32.mrb[0].mxu0
    %v616 = vadd.f32 %v150, %v615
    %v617 = vpop.f32.mrb[0].mxu0
    %v618 = vadd.f32 %v154, %v617
    %619 = vdwg.mxu0
    %620 = vst [vmem:[#allocation2] sm:$0xff] %v436
    %621 = vst [vmem:[#allocation2 + $0x8] sm:$0xff] %v438
    %622 = vst [vmem:[#allocation2 + $0x10] sm:$0xff] %v509
    %623 = vst [vmem:[#allocation2 + $0x18] sm:$0xff] %v511
    %624 = vst [vmem:[#allocation2 + $0x20] sm:$0xff] %v582
    %625 = vst [vmem:[#allocation2 + $0x28] sm:$0xff] %v584
    %626 = vst [vmem:[#allocation2 + $0x30] sm:$0xff] %v440
    %627 = vst [vmem:[#allocation2 + $0x38] sm:$0xff] %v442
    %628 = vst [vmem:[#allocation2 + $0x40] sm:$0xff] %v513
    %629 = vst [vmem:[#allocation2 + $0x48] sm:$0xff] %v515
    %630 = vst [vmem:[#allocation2 + $0x50] sm:$0xff] %v586
    %631 = vst [vmem:[#allocation2 + $0x58] sm:$0xff] %v588
    %632 = vst [vmem:[#allocation2 + $0x60] sm:$0xff] %v446
    %633 = vst [vmem:[#allocation2 + $0x68] sm:$0xff] %v448
    %634 = vst [vmem:[#allocation2 + $0x70] sm:$0xff] %v519
    %635 = vst [vmem:[#allocation2 + $0x78] sm:$0xff] %v521
    %636 = vst [vmem:[#allocation2 + $0x80] sm:$0xff] %v592
    %637 = vst [vmem:[#allocation2 + $0x88] sm:$0xff] %v594
    %638 = vst [vmem:[#allocation2 + $0x90] sm:$0xff] %v450
    %639 = vst [vmem:[#allocation2 + $0x98] sm:$0xff] %v452
    %640 = vst [vmem:[#allocation2 + $0xa0] sm:$0xff] %v523
    %641 = vst [vmem:[#allocation2 + $0xa8] sm:$0xff] %v525
    %642 = vst [vmem:[#allocation2 + $0xb0] sm:$0xff] %v596
    %643 = vst [vmem:[#allocation2 + $0xb8] sm:$0xff] %v598
    %644 = vst [vmem:[#allocation2 + $0xc0] sm:$0xff] %v456
    %645 = vst [vmem:[#allocation2 + $0xc8] sm:$0xff] %v458
    %646 = vst [vmem:[#allocation2 + $0xd0] sm:$0xff] %v529
    %647 = vst [vmem:[#allocation2 + $0xd8] sm:$0xff] %v531
    %648 = vst [vmem:[#allocation2 + $0xe0] sm:$0xff] %v602
    %649 = vst [vmem:[#allocation2 + $0xe8] sm:$0xff] %v604
    %650 = vst [vmem:[#allocation2 + $0xf0] sm:$0xff] %v460
    %651 = vst [vmem:[#allocation2 + $0xf8] sm:$0xff] %v462
    %652 = vst [vmem:[#allocation2 + $0x100] sm:$0xff] %v533
    %653 = vst [vmem:[#allocation2 + $0x108] sm:$0xff] %v535
    %654 = vst [vmem:[#allocation2 + $0x110] sm:$0xff] %v606
    %655 = vst [vmem:[#allocation2 + $0x118] sm:$0xff] %v608
    %656 = vst [vmem:[#allocation2 + $0x120] sm:$0xff] %v466
    %657 = vst [vmem:[#allocation2 + $0x128] sm:$0xff] %v468
    %658 = vst [vmem:[#allocation2 + $0x130] sm:$0xff] %v539
    %659 = vst [vmem:[#allocation2 + $0x138] sm:$0xff] %v541
    %660 = vst [vmem:[#allocation2 + $0x140] sm:$0xff] %v612
    %661 = vst [vmem:[#allocation2 + $0x148] sm:$0xff] %v614
    %662 = vst [vmem:[#allocation2 + $0x150] sm:$0xff] %v470
    %663 = vst [vmem:[#allocation2 + $0x158] sm:$0xff] %v472
    %664 = vst [vmem:[#allocation2 + $0x160] sm:$0xff] %v543
    %665 = vst [vmem:[#allocation2 + $0x168] sm:$0xff] %v545
    %666 = vst [vmem:[#allocation2 + $0x170] sm:$0xff] %v616
    %667 = vst [vmem:[#allocation2 + $0x178] sm:$0xff] %v618
    %v668 = vld [vmem:[%s1] sm:$0xff]
    %v669 = vld [vmem:[#allocation8] sm:$0xff]
    %v670 = vld [vmem:[#allocation8 + $0x8] sm:$0xff]
    %v671 = vld [vmem:[#allocation8 + $0x10] sm:$0xff]
    %v672 = vld [vmem:[#allocation8 + $0x18] sm:$0xff]
    %v673 = vld [vmem:[#allocation8 + $0x20] sm:$0xff]
    %v674 = vld [vmem:[#allocation8 + $0x28] sm:$0xff]
    %v675 = vld [vmem:[#allocation8 + $0x30] sm:$0xff]
    %v676 = vld [vmem:[#allocation8 + $0x38] sm:$0xff]
    %v677 = vld [vmem:[#allocation8 + $0x40] sm:$0xff]
    %v678 = vld [vmem:[#allocation8 + $0x48] sm:$0xff]
    %v679 = vld [vmem:[#allocation8 + $0x50] sm:$0xff]
    %v680 = vld [vmem:[#allocation8 + $0x58] sm:$0xff]
    %v681 = vld [vmem:[#allocation8 + $0x60] sm:$0xff]
    %v682 = vld [vmem:[#allocation8 + $0x68] sm:$0xff]
    %v683 = vld [vmem:[#allocation8 + $0x70] sm:$0xff]
    %v684 = vld [vmem:[#allocation8 + $0x78] sm:$0xff]
    %v685 = vld [vmem:[#allocation8 + $0x80] sm:$0xff]
    %v686 = vld [vmem:[#allocation8 + $0x88] sm:$0xff]
    %v687 = vld [vmem:[#allocation8 + $0x90] sm:$0xff]
    %v688 = vld [vmem:[#allocation8 + $0x98] sm:$0xff]
    %v689 = vld [vmem:[#allocation8 + $0xa0] sm:$0xff]
    %v690 = vld [vmem:[#allocation8 + $0xa8] sm:$0xff]
    %v691 = vld [vmem:[#allocation8 + $0xb0] sm:$0xff]
    %v692 = vld [vmem:[#allocation8 + $0xb8] sm:$0xff]
    %v693 = vld [vmem:[#allocation8 + $0xc0] sm:$0xff]
    %v694 = vld [vmem:[#allocation8 + $0xc8] sm:$0xff]
    %v695 = vld [vmem:[#allocation8 + $0xd0] sm:$0xff]
    %v696 = vld [vmem:[#allocation8 + $0xd8] sm:$0xff]
    %v697 = vld [vmem:[#allocation8 + $0xe0] sm:$0xff]
    %v698 = vld [vmem:[#allocation8 + $0xe8] sm:$0xff]
    %v699 = vld [vmem:[#allocation8 + $0xf0] sm:$0xff]
    %v700 = vld [vmem:[#allocation8 + $0xf8] sm:$0xff]
    %v701 = vld [vmem:[#allocation8 + $0x100] sm:$0xff]
    %v702 = vld [vmem:[#allocation8 + $0x108] sm:$0xff]
    %v703 = vld [vmem:[#allocation8 + $0x110] sm:$0xff]
    %v704 = vld [vmem:[#allocation8 + $0x118] sm:$0xff]
    %v705 = vld [vmem:[#allocation8 + $0x120] sm:$0xff]
    %v706 = vld [vmem:[#allocation8 + $0x128] sm:$0xff]
    %v707 = vld [vmem:[#allocation8 + $0x130] sm:$0xff]
    %v708 = vld [vmem:[#allocation8 + $0x138] sm:$0xff]
    %v709 = vld [vmem:[#allocation8 + $0x140] sm:$0xff]
    %v710 = vld [vmem:[#allocation8 + $0x148] sm:$0xff]
    %v711 = vld [vmem:[#allocation8 + $0x150] sm:$0xff]
    %v712 = vld [vmem:[#allocation8 + $0x158] sm:$0xff]
    %v713 = vld [vmem:[#allocation8 + $0x160] sm:$0xff]
    %v714 = vld [vmem:[#allocation8 + $0x168] sm:$0xff]
    %v715 = vld [vmem:[#allocation8 + $0x170] sm:$0xff]
    %v716 = vld [vmem:[#allocation8 + $0x178] sm:$0xff]
    %v717 = vld [vmem:[#allocation8 + $0x180] sm:$0xff]
    %v718 = vld [vmem:[#allocation8 + $0x188] sm:$0xff]
    %v719 = vld [vmem:[#allocation8 + $0x190] sm:$0xff]
    %v720 = vld [vmem:[#allocation8 + $0x198] sm:$0xff]
    %v721 = vld [vmem:[#allocation8 + $0x1a0] sm:$0xff]
    %v722 = vld [vmem:[#allocation8 + $0x1a8] sm:$0xff]
    %v723 = vld [vmem:[#allocation8 + $0x1b0] sm:$0xff]
    %v724 = vld [vmem:[#allocation8 + $0x1b8] sm:$0xff]
    %v725 = vld [vmem:[#allocation8 + $0x1c0] sm:$0xff]
    %v726 = vld [vmem:[#allocation8 + $0x1c8] sm:$0xff]
    %v727 = vld [vmem:[#allocation8 + $0x1d0] sm:$0xff]
    %v728 = vld [vmem:[#allocation8 + $0x1d8] sm:$0xff]
    %v729 = vld [vmem:[#allocation8 + $0x1e0] sm:$0xff]
    %v730 = vld [vmem:[#allocation8 + $0x1e8] sm:$0xff]
    %v731 = vld [vmem:[#allocation8 + $0x1f0] sm:$0xff]
    %v732 = vld [vmem:[#allocation8 + $0x1f8] sm:$0xff]
    %v733 = vld [vmem:[#allocation8 + $0x200] sm:$0xff]
    %v734 = vld [vmem:[#allocation8 + $0x208] sm:$0xff]
    %v735 = vld [vmem:[#allocation8 + $0x210] sm:$0xff]
    %v736 = vld [vmem:[#allocation8 + $0x218] sm:$0xff]
    %v737 = vld [vmem:[#allocation8 + $0x220] sm:$0xff]
    %v738 = vld [vmem:[#allocation8 + $0x228] sm:$0xff]
    %v739 = vld [vmem:[#allocation8 + $0x230] sm:$0xff]
    %v740 = vld [vmem:[#allocation8 + $0x238] sm:$0xff]
    %v741 = vld [vmem:[#allocation8 + $0x240] sm:$0xff]
    %v742 = vld [vmem:[#allocation8 + $0x248] sm:$0xff]
    %v743 = vld [vmem:[#allocation8 + $0x250] sm:$0xff]
    %v744 = vld [vmem:[#allocation8 + $0x258] sm:$0xff]
    %v745 = vld [vmem:[#allocation8 + $0x260] sm:$0xff]
    %v746 = vld [vmem:[#allocation8 + $0x268] sm:$0xff]
    %v747 = vld [vmem:[#allocation8 + $0x270] sm:$0xff]
    %v748 = vld [vmem:[#allocation8 + $0x278] sm:$0xff]
    %v749 = vld [vmem:[#allocation8 + $0x280] sm:$0xff]
    %v750 = vld [vmem:[#allocation8 + $0x288] sm:$0xff]
    %v751 = vld [vmem:[#allocation8 + $0x290] sm:$0xff]
    %v752 = vld [vmem:[#allocation8 + $0x298] sm:$0xff]
    %v753 = vld [vmem:[#allocation8 + $0x2a0] sm:$0xff]
    %v754 = vld [vmem:[#allocation8 + $0x2a8] sm:$0xff]
    %v755 = vld [vmem:[#allocation8 + $0x2b0] sm:$0xff]
    %v756 = vld [vmem:[#allocation8 + $0x2b8] sm:$0xff]
    %v757 = vld [vmem:[#allocation8 + $0x2c0] sm:$0xff]
    %v758 = vld [vmem:[#allocation8 + $0x2c8] sm:$0xff]
    %v759 = vld [vmem:[#allocation8 + $0x2d0] sm:$0xff]
    %v760 = vld [vmem:[#allocation8 + $0x2d8] sm:$0xff]
    %v761 = vld [vmem:[#allocation8 + $0x2e0] sm:$0xff]
    %v762 = vld [vmem:[#allocation8 + $0x2e8] sm:$0xff]
    %v763 = vld [vmem:[#allocation8 + $0x2f0] sm:$0xff]
    %v764 = vld [vmem:[#allocation8 + $0x2f8] sm:$0xff]
    %v765 = vld [vmem:[%s5] sm:$0x3f]
    %v767 = vlaneseq
    %v768 = vshrl.u32 %v767, 7
    %v769 = vsub.s32 0, %v768
    %v770 = vrot.slane %v765, %v769
    %v771 = vlaneseq
    %v772 = vshrl.u32 %v771, 7
    %v773 = vsub.s32 1, %v772
    %v774 = vrot.slane %v765, %v773
    %v775 = vlaneseq
    %v776 = vshrl.u32 %v775, 7
    %v777 = vsub.s32 2, %v776
    %v778 = vrot.slane %v765, %v777
    %v779 = vlaneseq
    %v780 = vshrl.u32 %v779, 7
    %v781 = vsub.s32 3, %v780
    %v782 = vrot.slane %v765, %v781
    %v783 = vlaneseq
    %v784 = vshrl.u32 %v783, 7
    %v785 = vsub.s32 4, %v784
    %v786 = vrot.slane %v765, %v785
    %v787 = vlaneseq
    %v788 = vshrl.u32 %v787, 7
    %v789 = vsub.s32 5, %v788
    %v790 = vrot.slane %v765, %v789
    loop: start=0, step=1, limit=8
    $region38: #{tpu_custom_call.1} parent=1 // loop_pre_header
      _
    $region39: #{tpu_custom_call.1} parent=1 // loop_header
      %s798 = sphi 0, %s802
      %p799 = scmp.ge.s32.totalorder %s798, 8
      %v803 = vphi 0.0, %v1495
      %v804 = vphi 0.0, %v1496
    $region40: #{tpu_custom_call.1} parent=1 // loop_header_branch
      %801 = sbr.rel (%p799) target = $region44
    $region41: #{tpu_custom_call.1} parent=1 // loop_body
      %s805 = ssub.s32 7, %s798
      %v806 = vpack.c.bf16 %v803, %v803
      %v807 = vpack.c.bf16 %v804, %v804
      %v904 = vunpack.c.l.b16 %v669
      %v905 = vunpack.c.h.b16 %v669
      %v906 = vunpack.c.l.b16 %v670
      %v907 = vunpack.c.h.b16 %v670
      %v908 = vunpack.c.l.b16 %v671
      %v909 = vunpack.c.h.b16 %v671
      %v910 = vunpack.c.l.b16 %v672
      %v911 = vunpack.c.h.b16 %v672
      %v912 = vunpack.c.l.b16 %v673
      %v913 = vunpack.c.h.b16 %v673
      %v914 = vunpack.c.l.b16 %v674
      %v915 = vunpack.c.h.b16 %v674
      %v916 = vunpack.c.l.b16 %v675
      %v917 = vunpack.c.h.b16 %v675
      %v918 = vunpack.c.l.b16 %v676
      %v919 = vunpack.c.h.b16 %v676
      %v920 = vunpack.c.l.b16 %v677
      %v921 = vunpack.c.h.b16 %v677
      %v922 = vunpack.c.l.b16 %v678
      %v923 = vunpack.c.h.b16 %v678
      %v924 = vunpack.c.l.b16 %v679
      %v925 = vunpack.c.h.b16 %v679
      %v926 = vunpack.c.l.b16 %v680
      %v927 = vunpack.c.h.b16 %v680
      %v928 = vunpack.c.l.b16 %v681
      %v929 = vunpack.c.h.b16 %v681
      %v930 = vunpack.c.l.b16 %v682
      %v931 = vunpack.c.h.b16 %v682
      %v932 = vunpack.c.l.b16 %v683
      %v933 = vunpack.c.h.b16 %v683
      %v934 = vunpack.c.l.b16 %v684
      %v935 = vunpack.c.h.b16 %v684
      %v936 = vunpack.c.l.b16 %v685
      %v937 = vunpack.c.h.b16 %v685
      %v938 = vunpack.c.l.b16 %v686
      %v939 = vunpack.c.h.b16 %v686
      %v940 = vunpack.c.l.b16 %v687
      %v941 = vunpack.c.h.b16 %v687
      %v942 = vunpack.c.l.b16 %v688
      %v943 = vunpack.c.h.b16 %v688
      %v944 = vunpack.c.l.b16 %v689
      %v945 = vunpack.c.h.b16 %v689
      %v946 = vunpack.c.l.b16 %v690
      %v947 = vunpack.c.h.b16 %v690
      %v948 = vunpack.c.l.b16 %v691
      %v949 = vunpack.c.h.b16 %v691
      %v950 = vunpack.c.l.b16 %v692
      %v951 = vunpack.c.h.b16 %v692
      %v952 = vunpack.c.l.b16 %v693
      %v953 = vunpack.c.h.b16 %v693
      %v954 = vunpack.c.l.b16 %v694
      %v955 = vunpack.c.h.b16 %v694
      %v956 = vunpack.c.l.b16 %v695
      %v957 = vunpack.c.h.b16 %v695
      %v958 = vunpack.c.l.b16 %v696
      %v959 = vunpack.c.h.b16 %v696
      %v960 = vunpack.c.l.b16 %v697
      %v961 = vunpack.c.h.b16 %v697
      %v962 = vunpack.c.l.b16 %v698
      %v963 = vunpack.c.h.b16 %v698
      %v964 = vunpack.c.l.b16 %v699
      %v965 = vunpack.c.h.b16 %v699
      %v966 = vunpack.c.l.b16 %v700
      %v967 = vunpack.c.h.b16 %v700
      %v968 = vunpack.c.l.b16 %v701
      %v969 = vunpack.c.h.b16 %v701
      %v970 = vunpack.c.l.b16 %v702
      %v971 = vunpack.c.h.b16 %v702
      %v972 = vunpack.c.l.b16 %v703
      %v973 = vunpack.c.h.b16 %v703
      %v974 = vunpack.c.l.b16 %v704
      %v975 = vunpack.c.h.b16 %v704
      %v976 = vunpack.c.l.b16 %v705
      %v977 = vunpack.c.h.b16 %v705
      %v978 = vunpack.c.l.b16 %v706
      %v979 = vunpack.c.h.b16 %v706
      %v980 = vunpack.c.l.b16 %v707
      %v981 = vunpack.c.h.b16 %v707
      %v982 = vunpack.c.l.b16 %v708
      %v983 = vunpack.c.h.b16 %v708
      %v984 = vunpack.c.l.b16 %v709
      %v985 = vunpack.c.h.b16 %v709
      %v986 = vunpack.c.l.b16 %v710
      %v987 = vunpack.c.h.b16 %v710
      %v988 = vunpack.c.l.b16 %v711
      %v989 = vunpack.c.h.b16 %v711
      %v990 = vunpack.c.l.b16 %v712
      %v991 = vunpack.c.h.b16 %v712
      %v992 = vunpack.c.l.b16 %v713
      %v993 = vunpack.c.h.b16 %v713
      %v994 = vunpack.c.l.b16 %v714
      %v995 = vunpack.c.h.b16 %v714
      %v996 = vunpack.c.l.b16 %v715
      %v997 = vunpack.c.h.b16 %v715
      %v998 = vunpack.c.l.b16 %v716
      %v999 = vunpack.c.h.b16 %v716
      %v1000 = vunpack.c.l.b16 %v717
      %v1001 = vunpack.c.h.b16 %v717
      %v1002 = vunpack.c.l.b16 %v718
      %v1003 = vunpack.c.h.b16 %v718
      %v1004 = vunpack.c.l.b16 %v719
      %v1005 = vunpack.c.h.b16 %v719
      %v1006 = vunpack.c.l.b16 %v720
      %v1007 = vunpack.c.h.b16 %v720
      %v1008 = vunpack.c.l.b16 %v721
      %v1009 = vunpack.c.h.b16 %v721
      %v1010 = vunpack.c.l.b16 %v722
      %v1011 = vunpack.c.h.b16 %v722
      %v1012 = vunpack.c.l.b16 %v723
      %v1013 = vunpack.c.h.b16 %v723
      %v1014 = vunpack.c.l.b16 %v724
      %v1015 = vunpack.c.h.b16 %v724
      %v1016 = vunpack.c.l.b16 %v725
      %v1017 = vunpack.c.h.b16 %v725
      %v1018 = vunpack.c.l.b16 %v726
      %v1019 = vunpack.c.h.b16 %v726
      %v1020 = vunpack.c.l.b16 %v727
      %v1021 = vunpack.c.h.b16 %v727
      %v1022 = vunpack.c.l.b16 %v728
      %v1023 = vunpack.c.h.b16 %v728
      %v1024 = vunpack.c.l.b16 %v729
      %v1025 = vunpack.c.h.b16 %v729
      %v1026 = vunpack.c.l.b16 %v730
      %v1027 = vunpack.c.h.b16 %v730
      %v1028 = vunpack.c.l.b16 %v731
      %v1029 = vunpack.c.h.b16 %v731
      %v1030 = vunpack.c.l.b16 %v732
      %v1031 = vunpack.c.h.b16 %v732
      %v1032 = vunpack.c.l.b16 %v733
      %v1033 = vunpack.c.h.b16 %v733
      %v1034 = vunpack.c.l.b16 %v734
      %v1035 = vunpack.c.h.b16 %v734
      %v1036 = vunpack.c.l.b16 %v735
      %v1037 = vunpack.c.h.b16 %v735
      %v1038 = vunpack.c.l.b16 %v736
      %v1039 = vunpack.c.h.b16 %v736
      %v1040 = vunpack.c.l.b16 %v737
      %v1041 = vunpack.c.h.b16 %v737
      %v1042 = vunpack.c.l.b16 %v738
      %v1043 = vunpack.c.h.b16 %v738
      %v1044 = vunpack.c.l.b16 %v739
      %v1045 = vunpack.c.h.b16 %v739
      %v1046 = vunpack.c.l.b16 %v740
      %v1047 = vunpack.c.h.b16 %v740
      %v1048 = vunpack.c.l.b16 %v741
      %v1049 = vunpack.c.h.b16 %v741
      %v1050 = vunpack.c.l.b16 %v742
      %v1051 = vunpack.c.h.b16 %v742
      %v1052 = vunpack.c.l.b16 %v743
      %v1053 = vunpack.c.h.b16 %v743
      %v1054 = vunpack.c.l.b16 %v744
      %v1055 = vunpack.c.h.b16 %v744
      %v1056 = vunpack.c.l.b16 %v745
      %v1057 = vunpack.c.h.b16 %v745
      %v1058 = vunpack.c.l.b16 %v746
      %v1059 = vunpack.c.h.b16 %v746
      %v1060 = vunpack.c.l.b16 %v747
      %v1061 = vunpack.c.h.b16 %v747
      %v1062 = vunpack.c.l.b16 %v748
      %v1063 = vunpack.c.h.b16 %v748
      %v1064 = vunpack.c.l.b16 %v749
      %v1065 = vunpack.c.h.b16 %v749
      %v1066 = vunpack.c.l.b16 %v750
      %v1067 = vunpack.c.h.b16 %v750
      %v1068 = vunpack.c.l.b16 %v751
      %v1069 = vunpack.c.h.b16 %v751
      %v1070 = vunpack.c.l.b16 %v752
      %v1071 = vunpack.c.h.b16 %v752
      %v1072 = vunpack.c.l.b16 %v753
      %v1073 = vunpack.c.h.b16 %v753
      %v1074 = vunpack.c.l.b16 %v754
      %v1075 = vunpack.c.h.b16 %v754
      %v1076 = vunpack.c.l.b16 %v755
      %v1077 = vunpack.c.h.b16 %v755
      %v1078 = vunpack.c.l.b16 %v756
      %v1079 = vunpack.c.h.b16 %v756
      %v1080 = vunpack.c.l.b16 %v757
      %v1081 = vunpack.c.h.b16 %v757
      %v1082 = vunpack.c.l.b16 %v758
      %v1083 = vunpack.c.h.b16 %v758
      %v1084 = vunpack.c.l.b16 %v759
      %v1085 = vunpack.c.h.b16 %v759
      %v1086 = vunpack.c.l.b16 %v760
      %v1087 = vunpack.c.h.b16 %v760
      %v1088 = vunpack.c.l.b16 %v761
      %v1089 = vunpack.c.h.b16 %v761
      %v1090 = vunpack.c.l.b16 %v762
      %v1091 = vunpack.c.h.b16 %v762
      %v1092 = vunpack.c.l.b16 %v763
      %v1093 = vunpack.c.h.b16 %v763
      %v1094 = vunpack.c.l.b16 %v764
      %v1095 = vunpack.c.h.b16 %v764
      %v1096 = vpack.c.b16 %v910, %v904
      %v1097 = vpack.c.b16 %v911, %v905
      %v1098 = vpack.c.b16 %v912, %v906
      %v1099 = vpack.c.b16 %v913, %v907
      %v1100 = vpack.c.b16 %v914, %v908
      %v1101 = vpack.c.b16 %v915, %v909
      %v1102 = vpack.c.b16 %v922, %v916
      %v1103 = vpack.c.b16 %v923, %v917
      %v1104 = vpack.c.b16 %v924, %v918
      %v1105 = vpack.c.b16 %v925, %v919
      %v1106 = vpack.c.b16 %v926, %v920
      %v1107 = vpack.c.b16 %v927, %v921
      %v1108 = vpack.c.b16 %v934, %v928
      %v1109 = vpack.c.b16 %v935, %v929
      %v1110 = vpack.c.b16 %v936, %v930
      %v1111 = vpack.c.b16 %v937, %v931
      %v1112 = vpack.c.b16 %v938, %v932
      %v1113 = vpack.c.b16 %v939, %v933
      %v1114 = vpack.c.b16 %v946, %v940
      %v1115 = vpack.c.b16 %v947, %v941
      %v1116 = vpack.c.b16 %v948, %v942
      %v1117 = vpack.c.b16 %v949, %v943
      %v1118 = vpack.c.b16 %v950, %v944
      %v1119 = vpack.c.b16 %v951, %v945
      %v1120 = vpack.c.b16 %v958, %v952
      %v1121 = vpack.c.b16 %v959, %v953
      %v1122 = vpack.c.b16 %v960, %v954
      %v1123 = vpack.c.b16 %v961, %v955
      %v1124 = vpack.c.b16 %v962, %v956
      %v1125 = vpack.c.b16 %v963, %v957
      %v1126 = vpack.c.b16 %v970, %v964
      %v1127 = vpack.c.b16 %v971, %v965
      %v1128 = vpack.c.b16 %v972, %v966
      %v1129 = vpack.c.b16 %v973, %v967
      %v1130 = vpack.c.b16 %v974, %v968
      %v1131 = vpack.c.b16 %v975, %v969
      %v1132 = vpack.c.b16 %v982, %v976
      %v1133 = vpack.c.b16 %v983, %v977
      %v1134 = vpack.c.b16 %v984, %v978
      %v1135 = vpack.c.b16 %v985, %v979
      %v1136 = vpack.c.b16 %v986, %v980
      %v1137 = vpack.c.b16 %v987, %v981
      %v1138 = vpack.c.b16 %v994, %v988
      %v1139 = vpack.c.b16 %v995, %v989
      %v1140 = vpack.c.b16 %v996, %v990
      %v1141 = vpack.c.b16 %v997, %v991
      %v1142 = vpack.c.b16 %v998, %v992
      %v1143 = vpack.c.b16 %v999, %v993
      %v1144 = vpack.c.b16 %v1006, %v1000
      %v1145 = vpack.c.b16 %v1007, %v1001
      %v1146 = vpack.c.b16 %v1008, %v1002
      %v1147 = vpack.c.b16 %v1009, %v1003
      %v1148 = vpack.c.b16 %v1010, %v1004
      %v1149 = vpack.c.b16 %v1011, %v1005
      %v1150 = vpack.c.b16 %v1018, %v1012
      %v1151 = vpack.c.b16 %v1019, %v1013
      %v1152 = vpack.c.b16 %v1020, %v1014
      %v1153 = vpack.c.b16 %v1021, %v1015
      %v1154 = vpack.c.b16 %v1022, %v1016
      %v1155 = vpack.c.b16 %v1023, %v1017
      %v1156 = vpack.c.b16 %v1030, %v1024
      %v1157 = vpack.c.b16 %v1031, %v1025
      %v1158 = vpack.c.b16 %v1032, %v1026
      %v1159 = vpack.c.b16 %v1033, %v1027
      %v1160 = vpack.c.b16 %v1034, %v1028
      %v1161 = vpack.c.b16 %v1035, %v1029
      %v1162 = vpack.c.b16 %v1042, %v1036
      %v1163 = vpack.c.b16 %v1043, %v1037
      %v1164 = vpack.c.b16 %v1044, %v1038
      %v1165 = vpack.c.b16 %v1045, %v1039
      %v1166 = vpack.c.b16 %v1046, %v1040
      %v1167 = vpack.c.b16 %v1047, %v1041
      %v1168 = vpack.c.b16 %v1054, %v1048
      %v1169 = vpack.c.b16 %v1055, %v1049
      %v1170 = vpack.c.b16 %v1056, %v1050
      %v1171 = vpack.c.b16 %v1057, %v1051
      %v1172 = vpack.c.b16 %v1058, %v1052
      %v1173 = vpack.c.b16 %v1059, %v1053
      %v1174 = vpack.c.b16 %v1066, %v1060
      %v1175 = vpack.c.b16 %v1067, %v1061
      %v1176 = vpack.c.b16 %v1068, %v1062
      %v1177 = vpack.c.b16 %v1069, %v1063
      %v1178 = vpack.c.b16 %v1070, %v1064
      %v1179 = vpack.c.b16 %v1071, %v1065
      %v1180 = vpack.c.b16 %v1078, %v1072
      %v1181 = vpack.c.b16 %v1079, %v1073
      %v1182 = vpack.c.b16 %v1080, %v1074
      %v1183 = vpack.c.b16 %v1081, %v1075
      %v1184 = vpack.c.b16 %v1082, %v1076
      %v1185 = vpack.c.b16 %v1083, %v1077
      %v1186 = vpack.c.b16 %v1090, %v1084
      %v1187 = vpack.c.b16 %v1091, %v1085
      %v1188 = vpack.c.b16 %v1092, %v1086
      %v1189 = vpack.c.b16 %v1093, %v1087
      %v1190 = vpack.c.b16 %v1094, %v1088
      %v1191 = vpack.c.b16 %v1095, %v1089
      %1288 = vmatprep.subr.bf16.mxu0 %v1097
      %1289 = vmatpush1.bf16.msra.mxu0 %v1096
      %1290 = vmatprep.subr.bf16.mxu0 %v1103
      %1291 = vmatpush1.bf16.msra.mxu0 %v1102
      %1292 = vmatprep.subr.bf16.mxu0 %v1109
      %1293 = vmatpush1.bf16.msra.mxu0 %v1108
      %1294 = vmatprep.subr.bf16.mxu0 %v1115
      %1295 = vmatpush1.bf16.msra.mxu0 %v1114
      %1296 = vmatprep.subr.bf16.mxu0 %v1121
      %1297 = vmatpush1.bf16.msra.mxu0 %v1120
      %1298 = vmatprep.subr.bf16.mxu0 %v1127
      %1299 = vmatpush1.bf16.msra.mxu0 %v1126
      %1300 = vmatprep.subr.bf16.mxu0 %v1133
      %1301 = vmatpush1.bf16.msra.mxu0 %v1132
      %1302 = vmatprep.subr.bf16.mxu0 %v1139
      %1303 = vmatpush1.bf16.msra.mxu0 %v1138
      %1304 = vmatprep.subr.bf16.mxu0 %v1145
      %1305 = vmatpush1.bf16.msra.mxu0 %v1144
      %1306 = vmatprep.subr.bf16.mxu0 %v1151
      %1307 = vmatpush1.bf16.msra.mxu0 %v1150
      %1308 = vmatprep.subr.bf16.mxu0 %v1157
      %1309 = vmatpush1.bf16.msra.mxu0 %v1156
      %1310 = vmatprep.subr.bf16.mxu0 %v1163
      %1311 = vmatpush1.bf16.msra.mxu0 %v1162
      %1312 = vmatprep.subr.bf16.mxu0 %v1169
      %1313 = vmatpush1.bf16.msra.mxu0 %v1168
      %1314 = vmatprep.subr.bf16.mxu0 %v1175
      %1315 = vmatpush1.bf16.msra.mxu0 %v1174
      %1316 = vmatprep.subr.bf16.mxu0 %v1181
      %1317 = vmatpush1.bf16.msra.mxu0 %v1180
      %1318 = vmatprep.subr.bf16.mxu0 %v1187
      %1319 = vmatpush1.bf16.msra.mxu0 %v1186
      %1320 = vmatprep.mubr.bf16.mxu0 %v807
      %1321 = vmatmul.mubr.bf16.gmra.mrb[0].mxu0 %v806
      %v1322 = vpop.f32.mrb[0].mxu0
      %v1323 = vadd.f32 %v770, %v1322
      %v1324 = vpop.f32.mrb[0].mxu0
      %v1325 = vadd.f32 %v774, %v1324
      %v1326 = vpop.f32.mrb[0].mxu0
      %v1327 = vpop.f32.mrb[0].mxu0
      %1328 = vdwg.mxu0
      %1329 = vmatprep.subr.bf16.mxu0 %v1099
      %1330 = vmatpush1.bf16.msra.mxu0 %v1098
      %1331 = vmatprep.subr.bf16.mxu0 %v1105
      %1332 = vmatpush1.bf16.msra.mxu0 %v1104
      %1333 = vmatprep.subr.bf16.mxu0 %v1111
      %1334 = vmatpush1.bf16.msra.mxu0 %v1110
      %1335 = vmatprep.subr.bf16.mxu0 %v1117
      %1336 = vmatpush1.bf16.msra.mxu0 %v1116
      %1337 = vmatprep.subr.bf16.mxu0 %v1123
      %1338 = vmatpush1.bf16.msra.mxu0 %v1122
      %1339 = vmatprep.subr.bf16.mxu0 %v1129
      %1340 = vmatpush1.bf16.msra.mxu0 %v1128
      %1341 = vmatprep.subr.bf16.mxu0 %v1135
      %1342 = vmatpush1.bf16.msra.mxu0 %v1134
      %1343 = vmatprep.subr.bf16.mxu0 %v1141
      %1344 = vmatpush1.bf16.msra.mxu0 %v1140
      %1345 = vmatprep.subr.bf16.mxu0 %v1147
      %1346 = vmatpush1.bf16.msra.mxu0 %v1146
      %1347 = vmatprep.subr.bf16.mxu0 %v1153
      %1348 = vmatpush1.bf16.msra.mxu0 %v1152
      %1349 = vmatprep.subr.bf16.mxu0 %v1159
      %1350 = vmatpush1.bf16.msra.mxu0 %v1158
      %1351 = vmatprep.subr.bf16.mxu0 %v1165
      %1352 = vmatpush1.bf16.msra.mxu0 %v1164
      %1353 = vmatprep.subr.bf16.mxu0 %v1171
      %1354 = vmatpush1.bf16.msra.mxu0 %v1170
      %1355 = vmatprep.subr.bf16.mxu0 %v1177
      %1356 = vmatpush1.bf16.msra.mxu0 %v1176
      %1357 = vmatprep.subr.bf16.mxu0 %v1183
      %1358 = vmatpush1.bf16.msra.mxu0 %v1182
      %1359 = vmatprep.subr.bf16.mxu0 %v1189
      %1360 = vmatpush1.bf16.msra.mxu0 %v1188
      %1361 = vmatprep.mubr.bf16.mxu0 %v807
      %1362 = vmatmul.mubr.bf16.gmra.mrb[0].mxu0 %v806
      %v1363 = vpop.f32.mrb[0].mxu0
      %v1364 = vadd.f32 %v778, %v1363
      %v1365 = vpop.f32.mrb[0].mxu0
      %v1366 = vadd.f32 %v782, %v1365
      %v1367 = vpop.f32.mrb[0].mxu0
      %v1368 = vpop.f32.mrb[0].mxu0
      %1369 = vdwg.mxu0
      %1370 = vmatprep.subr.bf16.mxu0 %v1101
      %1371 = vmatpush1.bf16.msra.mxu0 %v1100
      %1372 = vmatprep.subr.bf16.mxu0 %v1107
      %1373 = vmatpush1.bf16.msra.mxu0 %v1106
      %1374 = vmatprep.subr.bf16.mxu0 %v1113
      %1375 = vmatpush1.bf16.msra.mxu0 %v1112
      %1376 = vmatprep.subr.bf16.mxu0 %v1119
      %1377 = vmatpush1.bf16.msra.mxu0 %v1118
      %1378 = vmatprep.subr.bf16.mxu0 %v1125
      %1379 = vmatpush1.bf16.msra.mxu0 %v1124
      %1380 = vmatprep.subr.bf16.mxu0 %v1131
      %1381 = vmatpush1.bf16.msra.mxu0 %v1130
      %1382 = vmatprep.subr.bf16.mxu0 %v1137
      %1383 = vmatpush1.bf16.msra.mxu0 %v1136
      %1384 = vmatprep.subr.bf16.mxu0 %v1143
      %1385 = vmatpush1.bf16.msra.mxu0 %v1142
      %1386 = vmatprep.subr.bf16.mxu0 %v1149
      %1387 = vmatpush1.bf16.msra.mxu0 %v1148
      %1388 = vmatprep.subr.bf16.mxu0 %v1155
      %1389 = vmatpush1.bf16.msra.mxu0 %v1154
      %1390 = vmatprep.subr.bf16.mxu0 %v1161
      %1391 = vmatpush1.bf16.msra.mxu0 %v1160
      %1392 = vmatprep.subr.bf16.mxu0 %v1167
      %1393 = vmatpush1.bf16.msra.mxu0 %v1166
      %1394 = vmatprep.subr.bf16.mxu0 %v1173
      %1395 = vmatpush1.bf16.msra.mxu0 %v1172
      %1396 = vmatprep.subr.bf16.mxu0 %v1179
      %1397 = vmatpush1.bf16.msra.mxu0 %v1178
      %1398 = vmatprep.subr.bf16.mxu0 %v1185
      %1399 = vmatpush1.bf16.msra.mxu0 %v1184
      %1400 = vmatprep.subr.bf16.mxu0 %v1191
      %1401 = vmatpush1.bf16.msra.mxu0 %v1190
      %1402 = vmatprep.mubr.bf16.mxu0 %v807
      %1403 = vmatmul.mubr.bf16.gmra.mrb[0].mxu0 %v806
      %v1404 = vpop.f32.mrb[0].mxu0
      %v1405 = vadd.f32 %v786, %v1404
      %v1406 = vpop.f32.mrb[0].mxu0
      %v1407 = vadd.f32 %v790, %v1406
      %v1408 = vpop.f32.mrb[0].mxu0
      %v1409 = vpop.f32.mrb[0].mxu0
      %1410 = vdwg.mxu0
      %s1411 = smul.u32 %s798, 8
      %s1412 = smul.u32 %s805, 8
      %s1413 = sshra.s32 %s1411, 3
      %s1414 = sand.u32 %s1411, 7
      %s1415 = smul.u32 %s1413, 6
      %s1416 = smul.addr %s1415, 8
      %s1417 = scalar_lea.vmem [#allocation2], %s1416
      %v1418 = vld [vmem:[%s1417] sm:$0xff]
      %v1419 = vld [vmem:[%s1417 + $0x8] sm:$0xff]
      %v1420 = vld [vmem:[%s1417 + $0x10] sm:$0xff]
      %s1421 = sshra.s32 %s1412, 3
      %s1422 = sand.u32 %s1412, 7
      %s1423 = smul.u32 %s1421, 6
      %s1424 = smul.addr %s1423, 8
      %s1425 = scalar_lea.vmem [#allocation2], %s1424
      %v1426 = vld [vmem:[%s1425 + $0x18] sm:$0xff]
      %v1427 = vld [vmem:[%s1425 + $0x20] sm:$0xff]
      %v1428 = vld [vmem:[%s1425 + $0x28] sm:$0xff]
      %v1429 = vadd.f32 %v1418, %v1323
      %v1430 = vxor.u32 %v1429, 2147483648
      %v1431 = vmul.f32 %v1430, 1.442695
      %v1432 = vpow.pop %v1431
      %v1433 = vadd.f32 %v1432, 1.0
      %v1434 = vrcp.pop %v1433
      %v1435 = vmul.f32 1.0, %v1434
      %v1436 = vadd.f32 %v1419, %v1325
      %v1437 = vxor.u32 %v1436, 2147483648
      %v1438 = vmul.f32 %v1437, 1.442695
      %v1439 = vpow.pop %v1438
      %v1440 = vadd.f32 %v1439, 1.0
      %v1441 = vrcp.pop %v1440
      %v1442 = vmul.f32 1.0, %v1441
      %v1443 = vmul.f32 %v1435, %v1364
      %v1444 = vadd.f32 %v1420, %v1443
      %v1445 = vtanh.pop %v1444
      %v1446 = vsub.f32 1.0, %v1442
      %v1447 = vmul.f32 %v1446, %v1445
      %v1448 = vmul.f32 %v1442, %v803
      %v1449 = vadd.f32 %v1447, %v1448
      %v1450 = vadd.f32 %v1426, %v1366
      %v1451 = vxor.u32 %v1450, 2147483648
      %v1452 = vmul.f32 %v1451, 1.442695
      %v1453 = vpow.pop %v1452
      %v1454 = vadd.f32 %v1453, 1.0
      %v1455 = vrcp.pop %v1454
      %v1456 = vmul.f32 1.0, %v1455
      %v1457 = vadd.f32 %v1427, %v1405
      %v1458 = vxor.u32 %v1457, 2147483648
      %v1459 = vmul.f32 %v1458, 1.442695
      %v1460 = vpow.pop %v1459
      %v1461 = vadd.f32 %v1460, 1.0
      %v1462 = vrcp.pop %v1461
      %v1463 = vmul.f32 1.0, %v1462
      %v1464 = vmul.f32 %v1456, %v1407
      %v1465 = vadd.f32 %v1428, %v1464
      %v1466 = vtanh.pop %v1465
      %v1467 = vsub.f32 1.0, %v1463
      %v1468 = vmul.f32 %v1467, %v1466
      %v1469 = vmul.f32 %v1463, %v804
      %v1470 = vadd.f32 %v1468, %v1469
      %v1471 = vstv %s798
      %vm1472 = vcmp.gt.s32.totalorder %v668, %v1471
      %v1473 = vstv %s805
      %vm1474 = vcmp.gt.s32.totalorder %v668, %v1473
      %v1475 = vsel %vm1472, 1, 0
      %1476 = vset.pattern.permute.xlu0 0
      %1477 = vperm.xlu0 %1476, %v1475
      %v1478 = vpop.permute.xlu0 %1477
      %vm1479 = vcmp.eq.s32.totalorder %v1478, 1
      %v1480 = vsel %vm1479, %v1449, 0.0
      %s1481 = smul.u32 %s1413, 2
      %s1482 = smul.addr %s1481, 8
      %s1483 = scalar_lea.vmem [#allocation9], %s1482
      %1484 = vst [vmem:[%s1483] sm:$0xff] %v1480
      %v1485 = vsel %vm1474, 1, 0
      %1486 = vset.pattern.permute.xlu0 0
      %1487 = vperm.xlu0 %1486, %v1485
      %v1488 = vpop.permute.xlu0 %1487
      %vm1489 = vcmp.eq.s32.totalorder %v1488, 1
      %v1490 = vsel %vm1489, %v1470, 0.0
      %s1491 = smul.u32 %s1421, 2
      %s1492 = smul.addr %s1491, 8
      %s1493 = scalar_lea.vmem [#allocation9], %s1492
      %1494 = vst [vmem:[%s1493 + $0x8] sm:$0xff] %v1490
      %v1495 = vsel %vm1479, %v1449, %v803
      %v1496 = vsel %vm1489, %v1470, %v804
    $region42: #{tpu_custom_call.1} parent=1 // loop_footer
      %s802 = sadd.s32 1, %s798
    $region43: #{tpu_custom_call.1} parent=1 // loop_footer_branch
      %797 = sbr.rel target = $region39
    $region44: #{tpu_custom_call.1} parent=1 // loop_exit
      _
    %1497 = vst [vmem:[#allocation10] sm:$0xff] %v803
    %1498 = vst [vmem:[#allocation10 + $0x8] sm:$0xff] %v804
    // Predicated region
    $region45: #{tpu_custom_call.1} parent=1 // pred_check
      _
    $region46: #{tpu_custom_call.1} parent=1 // pred_check_branch
      %1500 = sbr.rel (0) target = $region48
    $region47: #{tpu_custom_call.1} parent=1 // pred_region
      %s1502 = ssub.s32 2048, 2048
      %1503 = vsyncadd [#allocation5], %s1502
      %s1504 = sshll.u32 [#allocation9], 4
      %s1505 = int_to_ptr.vmem [resolvable:$true] %s1504
      %1510 = dma.vmem_to_hbm [thread:$0]  %s1505, 2048, %s6, [#allocation5], 256, 256, 16
    $region48: #{tpu_custom_call.1} parent=1 // pred_fallthru
      _
    // Predicated region
    $region49: #{tpu_custom_call.1} parent=1 // pred_check
      _
    $region50: #{tpu_custom_call.1} parent=1 // pred_check_branch
      %1512 = sbr.rel (0) target = $region52
    $region51: #{tpu_custom_call.1} parent=1 // pred_region
      %s1514 = ssub.s32 256, 256
      %1515 = vsyncadd [#allocation11], %s1514
      %s1517 = sshll.u32 [#allocation10], 4
      %s1518 = int_to_ptr.vmem [resolvable:$true] %s1517
      %1520 = dma.vmem_to_hbm [thread:$0]  %s1518, 256, %s7, [#allocation11]
    $region52: #{tpu_custom_call.1} parent=1 // pred_fallthru
      _
    // Predicated region
    $region53: #{tpu_custom_call.1} parent=1 // pred_check
      _
    $region54: #{tpu_custom_call.1} parent=1 // pred_check_branch
      %1522 = sbr.rel (0) target = $region56
    $region55: #{tpu_custom_call.1} parent=1 // pred_region
      %1523 = dma.done [#allocation5], 2048
    $region56: #{tpu_custom_call.1} parent=1 // pred_fallthru
      _
    // Predicated region
    $region57: #{tpu_custom_call.1} parent=1 // pred_check
      _
    $region58: #{tpu_custom_call.1} parent=1 // pred_check_branch
      %1525 = sbr.rel (0) target = $region60
    $region59: #{tpu_custom_call.1} parent=1 // pred_region
      %1526 = dma.done [#allocation11], 256
    $region60: #{tpu_custom_call.1} parent=1 // pred_fallthru
      _
    %1527 = vsyncpa [#allocation4], 1
    %1528 = vsyncpa [#allocation7], 1
    %1529 = vsyncpa [#allocation5], 1
    %1530 = vsyncpa [#allocation11], 1

</llo_original>
